<compile_context>
chip_gen: v6e
topology: v6e:2x2x1
jax: 0.10.0
libtpu: 0.0.40
codegen_flags: <defaults>
</compile_context>

<pallas_src>
import functools

import jax
import jax.numpy as jnp
from jax import lax
from jax.experimental import pallas as pl
from jax.experimental.pallas import tpu as pltpu


# ----------------------------------------------------------------------------
# helpers
# ----------------------------------------------------------------------------

def _round_up(x, m):
    return (x + m - 1) // m * m


def _choose_tile(dim, max_tile):
    """Pick (padded_dim, tile). Full-dim block when small, else aligned tiles."""
    if dim <= max_tile:
        return dim, dim                      # single block == full dim (legal)
    return _round_up(dim, max_tile), max_tile


# ----------------------------------------------------------------------------
# Tiled linear:  y = x @ w_t + b   (w_t is the pre-transposed [K, N] weight)
# ----------------------------------------------------------------------------

def _linear_kernel(x_ref, w_ref, b_ref, o_ref, acc_ref):
    @pl.when(pl.program_id(2) == 0)
    def _():
        acc_ref[...] = jnp.zeros_like(acc_ref)

    acc_ref[...] += jnp.dot(x_ref[...], w_ref[...],
                            preferred_element_type=jnp.float32)

    @pl.when(pl.program_id(2) == pl.num_programs(2) - 1)
    def _():
        o_ref[...] = (acc_ref[...] + b_ref[...]).astype(o_ref.dtype)


def pallas_linear(x, w_t, b, out_dtype=jnp.float32,
                  tm_max=256, tn_max=512, tk_max=512):
    """x: (M, K) activations, w_t: (K, N) pre-transposed weight, b: (N,).

    Tile maxima (256, 512, 512) in bf16 keep double-buffered operands +
    fp32 accumulator well under the default scoped VMEM limit on v5e/v6e/v7x.
    On v6e (128 MiB VMEM) larger tiles (tm=512, tn=1024) can be used with an
    explicit vmem_limit_bytes; on v7x keep the smaller budget (64 MiB / 2 TC).
    """
    M, K = x.shape
    K2, N = w_t.shape
    assert K == K2
    Mp, tm = _choose_tile(M, tm_max)
    Np, tn = _choose_tile(N, tn_max)
    Kp, tk = _choose_tile(K, tk_max)

    xb = x.astype(jnp.bfloat16)
    wb = w_t.astype(jnp.bfloat16)
    bb = b.reshape(1, N).astype(jnp.float32)
    if (Mp, Kp) != (M, K):
        xb = jnp.pad(xb, ((0, Mp - M), (0, Kp - K)))
    if (Kp, Np) != (K, N):
        wb = jnp.pad(wb, ((0, Kp - K), (0, Np - N)))
    if Np != N:
        bb = jnp.pad(bb, ((0, 0), (0, Np - N)))

    grid = (Mp // tm, Np // tn, Kp // tk)
    out = pl.pallas_call(
        _linear_kernel,
        out_shape=jax.ShapeDtypeStruct((Mp, Np), out_dtype),
        grid_spec=pltpu.PrefetchScalarGridSpec(
            num_scalar_prefetch=0,
            grid=grid,
            in_specs=[pl.BlockSpec((tm, tk), lambda i, j, k: (i, k)),
                      pl.BlockSpec((tk, tn), lambda i, j, k: (k, j)),
                      pl.BlockSpec((1, tn), lambda i, j, k: (0, j))],
            out_specs=pl.BlockSpec((tm, tn), lambda i, j, k: (i, j)),
            scratch_shapes=[pltpu.VMEM((tm, tn), jnp.float32)]),
        compiler_params=pltpu.CompilerParams(
            dimension_semantics=("parallel", "parallel", "arbitrary")),
    )(xb, wb, bb)

    if (Mp, Np) != (M, N):
        out = out[:M, :N]
    return out


# ----------------------------------------------------------------------------
# Fused attention (per-batch block: scores + softmax + context stay in VMEM)
# ----------------------------------------------------------------------------
# TODO(synk): for long sequences this should become a flash-attention-style
# online-softmax over KV tiles; a single (nh, S, S) block is enough here.

def _attn_kernel(bias_ref, q_ref, k_ref, v_ref, o_ref, *, scale):
    q = q_ref[0]                              # (nh, S, hd) bf16
    k = k_ref[0]
    v = v_ref[0]
    s = jnp.einsum("nqd,nkd->nqk", q, k,
                   preferred_element_type=jnp.float32) * scale
    s = s + bias_ref[...]                     # (1, 1, S) additive mask bias
    s = s - jnp.max(s, axis=-1, keepdims=True)
    p = jnp.exp(s)
    p = p / jnp.sum(p, axis=-1, keepdims=True)
    ctx = jnp.einsum("nqk,nkd->nqd", p.astype(v.dtype), v,
                     preferred_element_type=jnp.float32)
    o_ref[...] = ctx[None]


def pallas_attention(q, k, v, attn_bias):
    """q, k, v: (B, nh, S, hd) bf16; attn_bias: (B, 1, S) f32 additive bias."""
    B, nh, S, hd = q.shape
    kernel = functools.partial(_attn_kernel, scale=1.0 / float(hd) ** 0.5)
    return pl.pallas_call(
        kernel,
        out_shape=jax.ShapeDtypeStruct((B, nh, S, hd), jnp.float32),
        grid_spec=pltpu.PrefetchScalarGridSpec(
            num_scalar_prefetch=0,
            grid=(B,),
            in_specs=[pl.BlockSpec((1, 1, S), lambda b: (b, 0, 0)),
                      pl.BlockSpec((1, nh, S, hd), lambda b: (b, 0, 0, 0)),
                      pl.BlockSpec((1, nh, S, hd), lambda b: (b, 0, 0, 0)),
                      pl.BlockSpec((1, nh, S, hd), lambda b: (b, 0, 0, 0))],
            out_specs=pl.BlockSpec((1, nh, S, hd), lambda b: (b, 0, 0, 0))),
        compiler_params=pltpu.CompilerParams(
            dimension_semantics=("parallel",)),
    )(attn_bias, q, k, v)


# ----------------------------------------------------------------------------
# HyBert head: masked-mean pooling -> optional projection -> logits ->
# log_softmax, fused in one kernel.  Hypernym dim padded to a lane-dense
# multiple of 128; padded logits masked out before the softmax.
# ----------------------------------------------------------------------------
# TODO(synk): for a very large hypernym vocabulary the (H, Np) embedding
# matmul should be tiled over Np with a two-pass (max / sum) log-softmax.

def _head_kernel(*refs, use_projection, n_valid):
    if use_projection:
        h_ref, m_ref, pw_ref, pb_ref, he_ref, rep_ref, lp_ref = refs
    else:
        h_ref, m_ref, he_ref, rep_ref, lp_ref = refs

    h = h_ref[...]                                          # (B, S, H) bf16
    m = m_ref[...]                                          # (B, S)   f32

    # masked mean pooling as a contraction over S (MXU instead of VPU+XLU)
    mb = m.astype(h.dtype)[:, None, :]                      # (B, 1, S)
    num = jnp.einsum("bqs,bsh->bqh", mb, h,
                     preferred_element_type=jnp.float32)[:, 0, :]   # (B, H)
    den = jnp.sum(m, axis=1, keepdims=True)                 # (B, 1)
    rep = num / jnp.maximum(den, 1e-6)                      # zero-mask guard

    if use_projection:
        rep = jnp.dot(rep.astype(jnp.bfloat16), pw_ref[...],
                      preferred_element_type=jnp.float32) + pb_ref[...]
    rep_ref[...] = rep

    logits = jnp.dot(rep.astype(jnp.bfloat16), he_ref[...],
                     preferred_element_type=jnp.float32)    # (B, Np) lane-dense
    col = lax.broadcasted_iota(jnp.int32, logits.shape, 1)
    logits = jnp.where(col < n_valid, logits, jnp.float32(-1e30))
    mx = jnp.max(logits, axis=1, keepdims=True)
    z = logits - mx
    lse = jnp.log(jnp.sum(jnp.exp(z), axis=1, keepdims=True))
    lp_ref[...] = z - lse


def hybert_head(h, hypo_mask, params, *, n_hyp, use_projection):
    B, S, H = h.shape
    he_t = params["hyper_emb_t"]                            # (H, Np) bf16
    Np = he_t.shape[1]

    inputs = [h.astype(jnp.bfloat16), hypo_mask.astype(jnp.float32)]
    if use_projection:
        inputs += [params["proj_wt"],
                   params["proj_b"].reshape(1, H).astype(jnp.float32)]
    inputs.append(he_t)

    kernel = functools.partial(_head_kernel, use_projection=use_projection,
                               n_valid=n_hyp)
    rep, lp = pl.pallas_call(
        kernel,
        out_shape=(jax.ShapeDtypeStruct((B, H), jnp.float32),
                   jax.ShapeDtypeStruct((B, Np), jnp.float32)),
        in_specs=[pl.BlockSpec(memory_space=pltpu.MemorySpace.VMEM)]
        * len(inputs),
        out_specs=(pl.BlockSpec(memory_space=pltpu.MemorySpace.VMEM),
                   pl.BlockSpec(memory_space=pltpu.MemorySpace.VMEM)),
    )(*inputs)
    return rep, lp[:, :n_hyp]


# ----------------------------------------------------------------------------
# Minimal deterministic BERT-style encoder (the injected `bert` submodule)
# ----------------------------------------------------------------------------
# TODO(synk): the original module wraps a full pretrained BertModel (external
# dependency); modeled here as a deterministic 1-layer encoder with the same
# (indices, attention_mask) -> last_hidden_state interface.

def _layer_norm(x, g, b, eps=1e-12):
    mu = jnp.mean(x, axis=-1, keepdims=True)
    var = jnp.mean((x - mu) ** 2, axis=-1, keepdims=True)
    return (x - mu) * lax.rsqrt(var + eps) * g + b


def mini_bert_encoder(params, indices, attention_mask, *, n_heads):
    B, S = indices.shape
    H = params["word_emb"].shape[1]
    hd = H // n_heads

    # TODO(synk): embedding gather / layernorm / gelu glue stays in XLA
    # (memory-bound, fp32 to stay safe on v5e's non-bf16 VPU/EUP).
    x = params["word_emb"][indices] + params["pos_emb"][:S][None, :, :]
    x = _layer_norm(x, params["ln0_g"], params["ln0_b"])

    x2 = x.reshape(B * S, H)
    # fused QKV projection: single tiled matmul over the [H, 3H] weight
    qkv = pallas_linear(x2, params["wqkv_t"], params["bqkv"])
    q, k, v = jnp.split(qkv, 3, axis=-1)

    def heads(t):
        return t.reshape(B, S, n_heads, hd).transpose(0, 2, 1, 3).astype(
            jnp.bfloat16)

    attn_bias = (1.0 - attention_mask.astype(jnp.float32))[:, None, :] * \
        jnp.float32(-1e9)                                    # (B, 1, S)
    ctx = pallas_attention(heads(q), heads(k), heads(v), attn_bias)
    ctx = ctx.transpose(0, 2, 1, 3).reshape(B * S, H)

    attn_out = pallas_linear(ctx, params["wo_t"], params["bo"]).reshape(B, S, H)
    x = _layer_norm(x + attn_out, params["ln1_g"], params["ln1_b"])

    ffn = pallas_linear(x.reshape(B * S, H), params["w1_t"], params["b1"])
    ffn = jax.nn.gelu(ffn, approximate=False)
    ffn = pallas_linear(ffn, params["w2_t"], params["b2"]).reshape(B, S, H)
    x = _layer_norm(x + ffn, params["ln2_g"], params["ln2_b"])
    return x


# ----------------------------------------------------------------------------
# HyBert forward
# ----------------------------------------------------------------------------

@functools.partial(jax.jit, static_argnames=("n_heads", "n_hyp",
                                             "use_projection"))
def hybert_forward(params, indices_batch, hypo_mask, attention_mask, *,
                   n_heads, n_hyp, use_projection=True):
    # h = bert(indices, attention_mask=attention_mask)[0]
    h = mini_bert_encoder(params, indices_batch, attention_mask,
                          n_heads=n_heads)
    # masked mean pooling + projection + hypernym logits + log_softmax (fused)
    rep, log_probs = hybert_head(h, hypo_mask, params, n_hyp=n_hyp,
                                 use_projection=use_projection)
    return rep, log_probs


# ----------------------------------------------------------------------------
# Parameter init / one-time preprocessing (transpose to [K,N], cast to bf16,
# concat QKV, pad hypernym matrix to a lane-dense width)
# ----------------------------------------------------------------------------

def _init_params(key, vocab, max_seq, hidden, ffn, n_hyp):
    keys = jax.random.split(key, 16)
    n = lambda k, s: (0.02 * jax.random.normal(k, s)).astype(jnp.float32)
    return {
        "word_emb": n(keys[0], (vocab, hidden)),
        "pos_emb": n(keys[1], (max_seq, hidden)),
        "ln0_g": jnp.ones((hidden,), jnp.float32),
        "ln0_b": jnp.zeros((hidden,), jnp.float32),
        "wq": n(keys[2], (hidden, hidden)), "bq": jnp.zeros((hidden,), jnp.float32),
        "wk": n(keys[3], (hidden, hidden)), "bk": jnp.zeros((hidden,), jnp.float32),
        "wv": n(keys[4], (hidden, hidden)), "bv": jnp.zeros((hidden,), jnp.float32),
        "wo": n(keys[5], (hidden, hidden)), "bo": jnp.zeros((hidden,), jnp.float32),
        "ln1_g": jnp.ones((hidden,), jnp.float32),
        "ln1_b": jnp.zeros((hidden,), jnp.float32),
        "w1": n(keys[6], (ffn, hidden)), "b1": jnp.zeros((ffn,), jnp.float32),
        "w2": n(keys[7], (hidden, ffn)), "b2": jnp.zeros((hidden,), jnp.float32),
        "ln2_g": jnp.ones((hidden,), jnp.float32),
        "ln2_b": jnp.zeros((hidden,), jnp.float32),
        # HyBert-specific parameters
        "proj_w": n(keys[8], (hidden, hidden)),
        "proj_b": jnp.zeros((hidden,), jnp.float32),
        "hypernym_embeddings": n(keys[9], (n_hyp, hidden)),
    }


def prepare_params(raw):
    """One-time: transpose torch [N,K] weights to [K,N], fuse QKV, cast bf16,
    pad the hypernym embedding matrix to a multiple of 128 columns."""
    bf = lambda a: a.astype(jnp.bfloat16)
    n_hyp, hidden = raw["hypernym_embeddings"].shape
    npad = _round_up(n_hyp, 128)
    he_t = jnp.pad(raw["hypernym_embeddings"].T, ((0, 0), (0, npad - n_hyp)))
    return {
        "word_emb": raw["word_emb"], "pos_emb": raw["pos_emb"],
        "ln0_g": raw["ln0_g"], "ln0_b": raw["ln0_b"],
        "ln1_g": raw["ln1_g"], "ln1_b": raw["ln1_b"],
        "ln2_g": raw["ln2_g"], "ln2_b": raw["ln2_b"],
        "wqkv_t": bf(jnp.concatenate([raw["wq"], raw["wk"], raw["wv"]],
                                     axis=0).T),
        "bqkv": jnp.concatenate([raw["bq"], raw["bk"], raw["bv"]]),
        "wo_t": bf(raw["wo"].T), "bo": raw["bo"],
        "w1_t": bf(raw["w1"].T), "b1": raw["b1"],
        "w2_t": bf(raw["w2"].T), "b2": raw["b2"],
        "proj_wt": bf(raw["proj_w"].T), "proj_b": raw["proj_b"],
        "hyper_emb_t": bf(he_t),
    }


# ----------------------------------------------------------------------------
# Main
# ----------------------------------------------------------------------------

if __name__ == "__main__":
    B, S, H = 2, 8, 32
    VOCAB, N_HEADS, FFN, N_HYP = 64, 4, 64, 16

    key = jax.random.PRNGKey(0)
    k_par, k_idx = jax.random.split(key, 2)

    params = prepare_params(_init_params(k_par, VOCAB, S, H, FFN, N_HYP))

    indices_batch = jax.random.randint(k_idx, (B, S), 0, VOCAB, dtype=jnp.int32)
    attention_mask = jnp.ones((B, S), jnp.float32)
    # hyponym mask: mark tokens 1..2 as the hyponym span in each example
    hypo_mask = jnp.zeros((B, S), jnp.float32).at[:, 1:3].set(1.0)

    rep, log_probs = hybert_forward(params, indices_batch, hypo_mask,
                                    attention_mask, n_heads=N_HEADS,
                                    n_hyp=N_HYP, use_projection=True)
    jax.block_until_ready((rep, log_probs))

    assert rep.shape == (B, H) and log_probs.shape == (B, N_HYP)
    assert bool(jnp.all(jnp.isfinite(rep)))
    assert bool(jnp.all(jnp.isfinite(log_probs)))
    print("KERNEL_OK")
</pallas_src>

<mosaic_0001>
module attributes {stable_mosaic.version = 11 : i64} {
  func.func @_linear_kernel(%arg0: i32, %arg1: i32, %arg2: i32, %arg3: memref<16x32xbf16, #tpu.memory_space<vmem>>, %arg4: memref<32x96xbf16, #tpu.memory_space<vmem>>, %arg5: memref<1x96xf32, #tpu.memory_space<vmem>>, %arg6: memref<16x96xf32, #tpu.memory_space<vmem>>, %arg7: memref<16x96xf32, #tpu.memory_space<vmem>>) attributes {dimension_semantics = [#tpu.dimension_semantics<parallel>, #tpu.dimension_semantics<parallel>, #tpu.dimension_semantics<arbitrary>], iteration_bounds = array<i64: 1, 1, 1>, scalar_prefetch = 0 : i64, scratch_operands = 1 : i64, tpu.core_type = #tpu.core_type<tc>, window_params = [{transform_indices = @transform_0, window_bounds = array<i64: 16, 32>}, {transform_indices = @transform_1, window_bounds = array<i64: 32, 96>}, {transform_indices = @transform_2, window_bounds = array<i64: 1, 96>}, {transform_indices = @transform_3, window_bounds = array<i64: 16, 96>}]} {
    %c0_i32 = arith.constant 0 : i32
    %0 = arith.cmpi eq, %arg2, %c0_i32 : i32
    %1 = arith.extui %0 : i1 to i32
    %c0_i32_0 = arith.constant 0 : i32
    %2 = arith.cmpi ne, %1, %c0_i32_0 : i32
    scf.if %2 {
      %cst_10 = arith.constant 0.000000e+00 : f32
      %12 = vector.broadcast %cst_10 : f32 to vector<16x96xf32>
      %c0_11 = arith.constant 0 : index
      %c0_12 = arith.constant 0 : index
      %13 = vector.load %arg7[%c0_11, %c0_12] : memref<16x96xf32, #tpu.memory_space<vmem>>, vector<16x96xf32>
      tpu.vector_store %arg7[%c0_11, %c0_12], %12 {strides = array<i32>} : memref<16x96xf32, #tpu.memory_space<vmem>>, vector<16x96xf32>,
    } else {
    }
    %c0 = arith.constant 0 : index
    %c0_1 = arith.constant 0 : index
    %3 = vector.load %arg7[%c0, %c0_1] : memref<16x96xf32, #tpu.memory_space<vmem>>, vector<16x96xf32>
    %c0_2 = arith.constant 0 : index
    %c0_3 = arith.constant 0 : index
    %4 = vector.load %arg3[%c0_2, %c0_3] : memref<16x32xbf16, #tpu.memory_space<vmem>>, vector<16x32xbf16>
    %c0_4 = arith.constant 0 : index
    %c0_5 = arith.constant 0 : index
    %5 = vector.load %arg4[%c0_4, %c0_5] : memref<32x96xbf16, #tpu.memory_space<vmem>>, vector<32x96xbf16>
    %cst = arith.constant dense<0.000000e+00> : vector<16x96xf32>
    %6 = tpu.matmul %4, %5, %cst {dimension_numbers = #tpu.dot_dimension_numbers<[1], [0], [0], [1], [0, 0, 1, 1], [], []>} : vector<16x32xbf16>, vector<32x96xbf16>, vector<16x96xf32> -> vector<16x96xf32>
    %7 = arith.addf %3, %6 : vector<16x96xf32>
    %c0_6 = arith.constant 0 : index
    %c0_7 = arith.constant 0 : index
    %8 = vector.load %arg7[%c0_6, %c0_7] : memref<16x96xf32, #tpu.memory_space<vmem>>, vector<16x96xf32>
    tpu.vector_store %arg7[%c0_6, %c0_7], %7 {strides = array<i32>} : memref<16x96xf32, #tpu.memory_space<vmem>>, vector<16x96xf32>,
    %c0_i32_8 = arith.constant 0 : i32
    %9 = arith.cmpi eq, %arg2, %c0_i32_8 : i32
    %10 = arith.extui %9 : i1 to i32
    %c0_i32_9 = arith.constant 0 : i32
    %11 = arith.cmpi ne, %10, %c0_i32_9 : i32
    scf.if %11 {
      %c0_10 = arith.constant 0 : index
      %c0_11 = arith.constant 0 : index
      %12 = vector.load %arg7[%c0_10, %c0_11] : memref<16x96xf32, #tpu.memory_space<vmem>>, vector<16x96xf32>
      %c0_12 = arith.constant 0 : index
      %c0_13 = arith.constant 0 : index
      %13 = vector.load %arg5[%c0_12, %c0_13] : memref<1x96xf32, #tpu.memory_space<vmem>>, vector<1x96xf32>
      %14 = vector.broadcast %13 : vector<1x96xf32> to vector<16x96xf32>
      %15 = arith.addf %12, %14 : vector<16x96xf32>
      %c0_14 = arith.constant 0 : index
      %c0_15 = arith.constant 0 : index
      %16 = vector.load %arg6[%c0_14, %c0_15] : memref<16x96xf32, #tpu.memory_space<vmem>>, vector<16x96xf32>
      tpu.vector_store %arg6[%c0_14, %c0_15], %15 {strides = array<i32>} : memref<16x96xf32, #tpu.memory_space<vmem>>, vector<16x96xf32>,
    } else {
    }
    return
  }
  func.func @transform_0(%arg0: i32, %arg1: i32, %arg2: i32) -> (i32, i32) {
    %c0_i32 = arith.constant 0 : i32
    return %arg0, %arg2 : i32, i32
  }
  func.func @transform_1(%arg0: i32, %arg1: i32, %arg2: i32) -> (i32, i32) {
    %c0_i32 = arith.constant 0 : i32
    return %arg2, %arg1 : i32, i32
  }
  func.func @transform_2(%arg0: i32, %arg1: i32, %arg2: i32) -> (i32, i32) {
    %c0_i32 = arith.constant 0 : i32
    %c0_i32_0 = arith.constant 0 : i32
    return %c0_i32, %arg1 : i32, i32
  }
  func.func @transform_3(%arg0: i32, %arg1: i32, %arg2: i32) -> (i32, i32) {
    %c0_i32 = arith.constant 0 : i32
    return %arg0, %arg1 : i32, i32
  }
}

module attributes {stable_mosaic.version = 11 : i64} {
  func.func @_attn_kernel(%arg0: i32, %arg1: memref<1x1x8xf32, #tpu.memory_space<vmem>>, %arg2: memref<1x4x8x8xbf16, #tpu.memory_space<vmem>>, %arg3: memref<1x4x8x8xbf16, #tpu.memory_space<vmem>>, %arg4: memref<1x4x8x8xbf16, #tpu.memory_space<vmem>>, %arg5: memref<1x4x8x8xf32, #tpu.memory_space<vmem>>) attributes {dimension_semantics = [#tpu.dimension_semantics<parallel>], iteration_bounds = array<i64: 2>, scalar_prefetch = 0 : i64, scratch_operands = 0 : i64, tpu.core_type = #tpu.core_type<tc>, window_params = [{transform_indices = @transform_0, window_bounds = array<i64: 1, 1, 8>}, {transform_indices = @transform_1, window_bounds = array<i64: 1, 4, 8, 8>}, {transform_indices = @transform_2, window_bounds = array<i64: 1, 4, 8, 8>}, {transform_indices = @transform_3, window_bounds = array<i64: 1, 4, 8, 8>}, {transform_indices = @transform_4, window_bounds = array<i64: 1, 4, 8, 8>}]} {
    %c0 = arith.constant 0 : index
    %c0_0 = arith.constant 0 : index
    %c0_1 = arith.constant 0 : index
    %c0_2 = arith.constant 0 : index
    %0 = vector.load %arg2[%c0, %c0_0, %c0_1, %c0_2] : memref<1x4x8x8xbf16, #tpu.memory_space<vmem>>, vector<1x4x8x8xbf16>
    %1 = vector.shape_cast %0 : vector<1x4x8x8xbf16> to vector<4x8x8xbf16>
    %c0_3 = arith.constant 0 : index
    %c0_4 = arith.constant 0 : index
    %c0_5 = arith.constant 0 : index
    %c0_6 = arith.constant 0 : index
    %2 = vector.load %arg3[%c0_3, %c0_4, %c0_5, %c0_6] : memref<1x4x8x8xbf16, #tpu.memory_space<vmem>>, vector<1x4x8x8xbf16>
    %3 = vector.shape_cast %2 : vector<1x4x8x8xbf16> to vector<4x8x8xbf16>
    %c0_7 = arith.constant 0 : index
    %c0_8 = arith.constant 0 : index
    %c0_9 = arith.constant 0 : index
    %c0_10 = arith.constant 0 : index
    %4 = vector.load %arg4[%c0_7, %c0_8, %c0_9, %c0_10] : memref<1x4x8x8xbf16, #tpu.memory_space<vmem>>, vector<1x4x8x8xbf16>
    %5 = vector.shape_cast %4 : vector<1x4x8x8xbf16> to vector<4x8x8xbf16>
    "tpu.trace_start"() <{level = 10 : i32, message = "nqd,nkd->nqk"}> : () -> ()
    %cst = arith.constant dense<0.000000e+00> : vector<4x8x8xf32>
    %6 = tpu.matmul %1, %3, %cst {dimension_numbers = #tpu.dot_dimension_numbers<[2], [2], [1], [1], [0, 0, 0, 1, 1, 1], [0], [0]>} : vector<4x8x8xbf16>, vector<4x8x8xbf16>, vector<4x8x8xf32> -> vector<4x8x8xf32>
    "tpu.trace_stop"() : () -> ()
    %cst_11 = arith.constant 0.353553385 : f32
    %7 = vector.broadcast %cst_11 : f32 to vector<4x8x8xf32>
    %8 = arith.mulf %6, %7 : vector<4x8x8xf32>
    %c0_12 = arith.constant 0 : index
    %c0_13 = arith.constant 0 : index
    %c0_14 = arith.constant 0 : index
    %9 = vector.load %arg1[%c0_12, %c0_13, %c0_14] : memref<1x1x8xf32, #tpu.memory_space<vmem>>, vector<1x1x8xf32>
    %10 = vector.broadcast %9 : vector<1x1x8xf32> to vector<4x8x8xf32>
    %11 = arith.addf %8, %10 : vector<4x8x8xf32>
    %cst_15 = arith.constant dense<0xFF800000> : vector<4x8xf32>
    %12 = vector.multi_reduction <maximumf>, %11, %cst_15 [2] : vector<4x8x8xf32> to vector<4x8xf32>
    %13 = vector.shape_cast %12 : vector<4x8xf32> to vector<4x8x1xf32>
    %14 = vector.broadcast %13 : vector<4x8x1xf32> to vector<4x8x8xf32>
    %15 = arith.subf %11, %14 : vector<4x8x8xf32>
    %16 = math.exp %15 : vector<4x8x8xf32>
    %cst_16 = arith.constant dense<0.000000e+00> : vector<4x8xf32>
    %17 = vector.multi_reduction <add>, %16, %cst_16 [2] : vector<4x8x8xf32> to vector<4x8xf32>
    %18 = vector.shape_cast %17 : vector<4x8xf32> to vector<4x8x1xf32>
    %19 = vector.broadcast %18 : vector<4x8x1xf32> to vector<4x8x8xf32>
    %20 = arith.divf %16, %19 : vector<4x8x8xf32>
    %21 = arith.truncf %20 : vector<4x8x8xf32> to vector<4x8x8xbf16>
    "tpu.trace_start"() <{level = 10 : i32, message = "nqk,nkd->nqd"}> : () -> ()
    %cst_17 = arith.constant dense<0.000000e+00> : vector<4x8x8xf32>
    %22 = tpu.matmul %21, %5, %cst_17 {dimension_numbers = #tpu.dot_dimension_numbers<[2], [1], [1], [2], [0, 0, 0, 1, 1, 2], [0], [0]>} : vector<4x8x8xbf16>, vector<4x8x8xbf16>, vector<4x8x8xf32> -> vector<4x8x8xf32>
    "tpu.trace_stop"() : () -> ()
    %23 = vector.shape_cast %22 : vector<4x8x8xf32> to vector<1x4x8x8xf32>
    %c0_18 = arith.constant 0 : index
    %c0_19 = arith.constant 0 : index
    %c0_20 = arith.constant 0 : index
    %c0_21 = arith.constant 0 : index
    %24 = vector.load %arg5[%c0_18, %c0_19, %c0_20, %c0_21] : memref<1x4x8x8xf32, #tpu.memory_space<vmem>>, vector<1x4x8x8xf32>
    tpu.vector_store %arg5[%c0_18, %c0_19, %c0_20, %c0_21], %23 {strides = array<i32>} : memref<1x4x8x8xf32, #tpu.memory_space<vmem>>, vector<1x4x8x8xf32>,
    return
  }
  func.func @transform_0(%arg0: i32) -> (i32, i32, i32) {
    %c0_i32 = arith.constant 0 : i32
    %c0_i32_0 = arith.constant 0 : i32
    %c0_i32_1 = arith.constant 0 : i32
    return %arg0, %c0_i32, %c0_i32_0 : i32, i32, i32
  }
  func.func @transform_1(%arg0: i32) -> (i32, i32, i32, i32) {
    %c0_i32 = arith.constant 0 : i32
    %c0_i32_0 = arith.constant 0 : i32
    %c0_i32_1 = arith.constant 0 : i32
    %c0_i32_2 = arith.constant 0 : i32
    return %arg0, %c0_i32, %c0_i32_0, %c0_i32_1 : i32, i32, i32, i32
  }
  func.func @transform_2(%arg0: i32) -> (i32, i32, i32, i32) {
    %c0_i32 = arith.constant 0 : i32
    %c0_i32_0 = arith.constant 0 : i32
    %c0_i32_1 = arith.constant 0 : i32
    %c0_i32_2 = arith.constant 0 : i32
    return %arg0, %c0_i32, %c0_i32_0, %c0_i32_1 : i32, i32, i32, i32
  }
  func.func @transform_3(%arg0: i32) -> (i32, i32, i32, i32) {
    %c0_i32 = arith.constant 0 : i32
    %c0_i32_0 = arith.constant 0 : i32
    %c0_i32_1 = arith.constant 0 : i32
    %c0_i32_2 = arith.constant 0 : i32
    return %arg0, %c0_i32, %c0_i32_0, %c0_i32_1 : i32, i32, i32, i32
  }
  func.func @transform_4(%arg0: i32) -> (i32, i32, i32, i32) {
    %c0_i32 = arith.constant 0 : i32
    %c0_i32_0 = arith.constant 0 : i32
    %c0_i32_1 = arith.constant 0 : i32
    %c0_i32_2 = arith.constant 0 : i32
    return %arg0, %c0_i32, %c0_i32_0, %c0_i32_1 : i32, i32, i32, i32
  }
}

module attributes {stable_mosaic.version = 11 : i64} {
  func.func @_linear_kernel(%arg0: i32, %arg1: i32, %arg2: i32, %arg3: memref<16x32xbf16, #tpu.memory_space<vmem>>, %arg4: memref<32x32xbf16, #tpu.memory_space<vmem>>, %arg5: memref<1x32xf32, #tpu.memory_space<vmem>>, %arg6: memref<16x32xf32, #tpu.memory_space<vmem>>, %arg7: memref<16x32xf32, #tpu.memory_space<vmem>>) attributes {dimension_semantics = [#tpu.dimension_semantics<parallel>, #tpu.dimension_semantics<parallel>, #tpu.dimension_semantics<arbitrary>], iteration_bounds = array<i64: 1, 1, 1>, scalar_prefetch = 0 : i64, scratch_operands = 1 : i64, tpu.core_type = #tpu.core_type<tc>, window_params = [{transform_indices = @transform_0, window_bounds = array<i64: 16, 32>}, {transform_indices = @transform_1, window_bounds = array<i64: 32, 32>}, {transform_indices = @transform_2, window_bounds = array<i64: 1, 32>}, {transform_indices = @transform_3, window_bounds = array<i64: 16, 32>}]} {
    %c0_i32 = arith.constant 0 : i32
    %0 = arith.cmpi eq, %arg2, %c0_i32 : i32
    %1 = arith.extui %0 : i1 to i32
    %c0_i32_0 = arith.constant 0 : i32
    %2 = arith.cmpi ne, %1, %c0_i32_0 : i32
    scf.if %2 {
      %cst_10 = arith.constant 0.000000e+00 : f32
      %12 = vector.broadcast %cst_10 : f32 to vector<16x32xf32>
      %c0_11 = arith.constant 0 : index
      %c0_12 = arith.constant 0 : index
      %13 = vector.load %arg7[%c0_11, %c0_12] : memref<16x32xf32, #tpu.memory_space<vmem>>, vector<16x32xf32>
      tpu.vector_store %arg7[%c0_11, %c0_12], %12 {strides = array<i32>} : memref<16x32xf32, #tpu.memory_space<vmem>>, vector<16x32xf32>,
    } else {
    }
    %c0 = arith.constant 0 : index
    %c0_1 = arith.constant 0 : index
    %3 = vector.load %arg7[%c0, %c0_1] : memref<16x32xf32, #tpu.memory_space<vmem>>, vector<16x32xf32>
    %c0_2 = arith.constant 0 : index
    %c0_3 = arith.constant 0 : index
    %4 = vector.load %arg3[%c0_2, %c0_3] : memref<16x32xbf16, #tpu.memory_space<vmem>>, vector<16x32xbf16>
    %c0_4 = arith.constant 0 : index
    %c0_5 = arith.constant 0 : index
    %5 = vector.load %arg4[%c0_4, %c0_5] : memref<32x32xbf16, #tpu.memory_space<vmem>>, vector<32x32xbf16>
    %cst = arith.constant dense<0.000000e+00> : vector<16x32xf32>
    %6 = tpu.matmul %4, %5, %cst {dimension_numbers = #tpu.dot_dimension_numbers<[1], [0], [0], [1], [0, 0, 1, 1], [], []>} : vector<16x32xbf16>, vector<32x32xbf16>, vector<16x32xf32> -> vector<16x32xf32>
    %7 = arith.addf %3, %6 : vector<16x32xf32>
    %c0_6 = arith.constant 0 : index
    %c0_7 = arith.constant 0 : index
    %8 = vector.load %arg7[%c0_6, %c0_7] : memref<16x32xf32, #tpu.memory_space<vmem>>, vector<16x32xf32>
    tpu.vector_store %arg7[%c0_6, %c0_7], %7 {strides = array<i32>} : memref<16x32xf32, #tpu.memory_space<vmem>>, vector<16x32xf32>,
    %c0_i32_8 = arith.constant 0 : i32
    %9 = arith.cmpi eq, %arg2, %c0_i32_8 : i32
    %10 = arith.extui %9 : i1 to i32
    %c0_i32_9 = arith.constant 0 : i32
    %11 = arith.cmpi ne, %10, %c0_i32_9 : i32
    scf.if %11 {
      %c0_10 = arith.constant 0 : index
      %c0_11 = arith.constant 0 : index
      %12 = vector.load %arg7[%c0_10, %c0_11] : memref<16x32xf32, #tpu.memory_space<vmem>>, vector<16x32xf32>
      %c0_12 = arith.constant 0 : index
      %c0_13 = arith.constant 0 : index
      %13 = vector.load %arg5[%c0_12, %c0_13] : memref<1x32xf32, #tpu.memory_space<vmem>>, vector<1x32xf32>
      %14 = vector.broadcast %13 : vector<1x32xf32> to vector<16x32xf32>
      %15 = arith.addf %12, %14 : vector<16x32xf32>
      %c0_14 = arith.constant 0 : index
      %c0_15 = arith.constant 0 : index
      %16 = vector.load %arg6[%c0_14, %c0_15] : memref<16x32xf32, #tpu.memory_space<vmem>>, vector<16x32xf32>
      tpu.vector_store %arg6[%c0_14, %c0_15], %15 {strides = array<i32>} : memref<16x32xf32, #tpu.memory_space<vmem>>, vector<16x32xf32>,
    } else {
    }
    return
  }
  func.func @transform_0(%arg0: i32, %arg1: i32, %arg2: i32) -> (i32, i32) {
    %c0_i32 = arith.constant 0 : i32
    return %arg0, %arg2 : i32, i32
  }
  func.func @transform_1(%arg0: i32, %arg1: i32, %arg2: i32) -> (i32, i32) {
    %c0_i32 = arith.constant 0 : i32
    return %arg2, %arg1 : i32, i32
  }
  func.func @transform_2(%arg0: i32, %arg1: i32, %arg2: i32) -> (i32, i32) {
    %c0_i32 = arith.constant 0 : i32
    %c0_i32_0 = arith.constant 0 : i32
    return %c0_i32, %arg1 : i32, i32
  }
  func.func @transform_3(%arg0: i32, %arg1: i32, %arg2: i32) -> (i32, i32) {
    %c0_i32 = arith.constant 0 : i32
    return %arg0, %arg1 : i32, i32
  }
}

module attributes {stable_mosaic.version = 11 : i64} {
  func.func @_linear_kernel(%arg0: i32, %arg1: i32, %arg2: i32, %arg3: memref<16x32xbf16, #tpu.memory_space<vmem>>, %arg4: memref<32x64xbf16, #tpu.memory_space<vmem>>, %arg5: memref<1x64xf32, #tpu.memory_space<vmem>>, %arg6: memref<16x64xf32, #tpu.memory_space<vmem>>, %arg7: memref<16x64xf32, #tpu.memory_space<vmem>>) attributes {dimension_semantics = [#tpu.dimension_semantics<parallel>, #tpu.dimension_semantics<parallel>, #tpu.dimension_semantics<arbitrary>], iteration_bounds = array<i64: 1, 1, 1>, scalar_prefetch = 0 : i64, scratch_operands = 1 : i64, tpu.core_type = #tpu.core_type<tc>, window_params = [{transform_indices = @transform_0, window_bounds = array<i64: 16, 32>}, {transform_indices = @transform_1, window_bounds = array<i64: 32, 64>}, {transform_indices = @transform_2, window_bounds = array<i64: 1, 64>}, {transform_indices = @transform_3, window_bounds = array<i64: 16, 64>}]} {
    %c0_i32 = arith.constant 0 : i32
    %0 = arith.cmpi eq, %arg2, %c0_i32 : i32
    %1 = arith.extui %0 : i1 to i32
    %c0_i32_0 = arith.constant 0 : i32
    %2 = arith.cmpi ne, %1, %c0_i32_0 : i32
    scf.if %2 {
      %cst_10 = arith.constant 0.000000e+00 : f32
      %12 = vector.broadcast %cst_10 : f32 to vector<16x64xf32>
      %c0_11 = arith.constant 0 : index
      %c0_12 = arith.constant 0 : index
      %13 = vector.load %arg7[%c0_11, %c0_12] : memref<16x64xf32, #tpu.memory_space<vmem>>, vector<16x64xf32>
      tpu.vector_store %arg7[%c0_11, %c0_12], %12 {strides = array<i32>} : memref<16x64xf32, #tpu.memory_space<vmem>>, vector<16x64xf32>,
    } else {
    }
    %c0 = arith.constant 0 : index
    %c0_1 = arith.constant 0 : index
    %3 = vector.load %arg7[%c0, %c0_1] : memref<16x64xf32, #tpu.memory_space<vmem>>, vector<16x64xf32>
    %c0_2 = arith.constant 0 : index
    %c0_3 = arith.constant 0 : index
    %4 = vector.load %arg3[%c0_2, %c0_3] : memref<16x32xbf16, #tpu.memory_space<vmem>>, vector<16x32xbf16>
    %c0_4 = arith.constant 0 : index
    %c0_5 = arith.constant 0 : index
    %5 = vector.load %arg4[%c0_4, %c0_5] : memref<32x64xbf16, #tpu.memory_space<vmem>>, vector<32x64xbf16>
    %cst = arith.constant dense<0.000000e+00> : vector<16x64xf32>
    %6 = tpu.matmul %4, %5, %cst {dimension_numbers = #tpu.dot_dimension_numbers<[1], [0], [0], [1], [0, 0, 1, 1], [], []>} : vector<16x32xbf16>, vector<32x64xbf16>, vector<16x64xf32> -> vector<16x64xf32>
    %7 = arith.addf %3, %6 : vector<16x64xf32>
    %c0_6 = arith.constant 0 : index
    %c0_7 = arith.constant 0 : index
    %8 = vector.load %arg7[%c0_6, %c0_7] : memref<16x64xf32, #tpu.memory_space<vmem>>, vector<16x64xf32>
    tpu.vector_store %arg7[%c0_6, %c0_7], %7 {strides = array<i32>} : memref<16x64xf32, #tpu.memory_space<vmem>>, vector<16x64xf32>,
    %c0_i32_8 = arith.constant 0 : i32
    %9 = arith.cmpi eq, %arg2, %c0_i32_8 : i32
    %10 = arith.extui %9 : i1 to i32
    %c0_i32_9 = arith.constant 0 : i32
    %11 = arith.cmpi ne, %10, %c0_i32_9 : i32
    scf.if %11 {
      %c0_10 = arith.constant 0 : index
      %c0_11 = arith.constant 0 : index
      %12 = vector.load %arg7[%c0_10, %c0_11] : memref<16x64xf32, #tpu.memory_space<vmem>>, vector<16x64xf32>
      %c0_12 = arith.constant 0 : index
      %c0_13 = arith.constant 0 : index
      %13 = vector.load %arg5[%c0_12, %c0_13] : memref<1x64xf32, #tpu.memory_space<vmem>>, vector<1x64xf32>
      %14 = vector.broadcast %13 : vector<1x64xf32> to vector<16x64xf32>
      %15 = arith.addf %12, %14 : vector<16x64xf32>
      %c0_14 = arith.constant 0 : index
      %c0_15 = arith.constant 0 : index
      %16 = vector.load %arg6[%c0_14, %c0_15] : memref<16x64xf32, #tpu.memory_space<vmem>>, vector<16x64xf32>
      tpu.vector_store %arg6[%c0_14, %c0_15], %15 {strides = array<i32>} : memref<16x64xf32, #tpu.memory_space<vmem>>, vector<16x64xf32>,
    } else {
    }
    return
  }
  func.func @transform_0(%arg0: i32, %arg1: i32, %arg2: i32) -> (i32, i32) {
    %c0_i32 = arith.constant 0 : i32
    return %arg0, %arg2 : i32, i32
  }
  func.func @transform_1(%arg0: i32, %arg1: i32, %arg2: i32) -> (i32, i32) {
    %c0_i32 = arith.constant 0 : i32
    return %arg2, %arg1 : i32, i32
  }
  func.func @transform_2(%arg0: i32, %arg1: i32, %arg2: i32) -> (i32, i32) {
    %c0_i32 = arith.constant 0 : i32
    %c0_i32_0 = arith.constant 0 : i32
    return %c0_i32, %arg1 : i32, i32
  }
  func.func @transform_3(%arg0: i32, %arg1: i32, %arg2: i32) -> (i32, i32) {
    %c0_i32 = arith.constant 0 : i32
    return %arg0, %arg1 : i32, i32
  }
}

module attributes {stable_mosaic.version = 11 : i64} {
  func.func @_linear_kernel(%arg0: i32, %arg1: i32, %arg2: i32, %arg3: memref<16x64xbf16, #tpu.memory_space<vmem>>, %arg4: memref<64x32xbf16, #tpu.memory_space<vmem>>, %arg5: memref<1x32xf32, #tpu.memory_space<vmem>>, %arg6: memref<16x32xf32, #tpu.memory_space<vmem>>, %arg7: memref<16x32xf32, #tpu.memory_space<vmem>>) attributes {dimension_semantics = [#tpu.dimension_semantics<parallel>, #tpu.dimension_semantics<parallel>, #tpu.dimension_semantics<arbitrary>], iteration_bounds = array<i64: 1, 1, 1>, scalar_prefetch = 0 : i64, scratch_operands = 1 : i64, tpu.core_type = #tpu.core_type<tc>, window_params = [{transform_indices = @transform_0, window_bounds = array<i64: 16, 64>}, {transform_indices = @transform_1, window_bounds = array<i64: 64, 32>}, {transform_indices = @transform_2, window_bounds = array<i64: 1, 32>}, {transform_indices = @transform_3, window_bounds = array<i64: 16, 32>}]} {
    %c0_i32 = arith.constant 0 : i32
    %0 = arith.cmpi eq, %arg2, %c0_i32 : i32
    %1 = arith.extui %0 : i1 to i32
    %c0_i32_0 = arith.constant 0 : i32
    %2 = arith.cmpi ne, %1, %c0_i32_0 : i32
    scf.if %2 {
      %cst_10 = arith.constant 0.000000e+00 : f32
      %12 = vector.broadcast %cst_10 : f32 to vector<16x32xf32>
      %c0_11 = arith.constant 0 : index
      %c0_12 = arith.constant 0 : index
      %13 = vector.load %arg7[%c0_11, %c0_12] : memref<16x32xf32, #tpu.memory_space<vmem>>, vector<16x32xf32>
      tpu.vector_store %arg7[%c0_11, %c0_12], %12 {strides = array<i32>} : memref<16x32xf32, #tpu.memory_space<vmem>>, vector<16x32xf32>,
    } else {
    }
    %c0 = arith.constant 0 : index
    %c0_1 = arith.constant 0 : index
    %3 = vector.load %arg7[%c0, %c0_1] : memref<16x32xf32, #tpu.memory_space<vmem>>, vector<16x32xf32>
    %c0_2 = arith.constant 0 : index
    %c0_3 = arith.constant 0 : index
    %4 = vector.load %arg3[%c0_2, %c0_3] : memref<16x64xbf16, #tpu.memory_space<vmem>>, vector<16x64xbf16>
    %c0_4 = arith.constant 0 : index
    %c0_5 = arith.constant 0 : index
    %5 = vector.load %arg4[%c0_4, %c0_5] : memref<64x32xbf16, #tpu.memory_space<vmem>>, vector<64x32xbf16>
    %cst = arith.constant dense<0.000000e+00> : vector<16x32xf32>
    %6 = tpu.matmul %4, %5, %cst {dimension_numbers = #tpu.dot_dimension_numbers<[1], [0], [0], [1], [0, 0, 1, 1], [], []>} : vector<16x64xbf16>, vector<64x32xbf16>, vector<16x32xf32> -> vector<16x32xf32>
    %7 = arith.addf %3, %6 : vector<16x32xf32>
    %c0_6 = arith.constant 0 : index
    %c0_7 = arith.constant 0 : index
    %8 = vector.load %arg7[%c0_6, %c0_7] : memref<16x32xf32, #tpu.memory_space<vmem>>, vector<16x32xf32>
    tpu.vector_store %arg7[%c0_6, %c0_7], %7 {strides = array<i32>} : memref<16x32xf32, #tpu.memory_space<vmem>>, vector<16x32xf32>,
    %c0_i32_8 = arith.constant 0 : i32
    %9 = arith.cmpi eq, %arg2, %c0_i32_8 : i32
    %10 = arith.extui %9 : i1 to i32
    %c0_i32_9 = arith.constant 0 : i32
    %11 = arith.cmpi ne, %10, %c0_i32_9 : i32
    scf.if %11 {
      %c0_10 = arith.constant 0 : index
      %c0_11 = arith.constant 0 : index
      %12 = vector.load %arg7[%c0_10, %c0_11] : memref<16x32xf32, #tpu.memory_space<vmem>>, vector<16x32xf32>
      %c0_12 = arith.constant 0 : index
      %c0_13 = arith.constant 0 : index
      %13 = vector.load %arg5[%c0_12, %c0_13] : memref<1x32xf32, #tpu.memory_space<vmem>>, vector<1x32xf32>
      %14 = vector.broadcast %13 : vector<1x32xf32> to vector<16x32xf32>
      %15 = arith.addf %12, %14 : vector<16x32xf32>
      %c0_14 = arith.constant 0 : index
      %c0_15 = arith.constant 0 : index
      %16 = vector.load %arg6[%c0_14, %c0_15] : memref<16x32xf32, #tpu.memory_space<vmem>>, vector<16x32xf32>
      tpu.vector_store %arg6[%c0_14, %c0_15], %15 {strides = array<i32>} : memref<16x32xf32, #tpu.memory_space<vmem>>, vector<16x32xf32>,
    } else {
    }
    return
  }
  func.func @transform_0(%arg0: i32, %arg1: i32, %arg2: i32) -> (i32, i32) {
    %c0_i32 = arith.constant 0 : i32
    return %arg0, %arg2 : i32, i32
  }
  func.func @transform_1(%arg0: i32, %arg1: i32, %arg2: i32) -> (i32, i32) {
    %c0_i32 = arith.constant 0 : i32
    return %arg2, %arg1 : i32, i32
  }
  func.func @transform_2(%arg0: i32, %arg1: i32, %arg2: i32) -> (i32, i32) {
    %c0_i32 = arith.constant 0 : i32
    %c0_i32_0 = arith.constant 0 : i32
    return %c0_i32, %arg1 : i32, i32
  }
  func.func @transform_3(%arg0: i32, %arg1: i32, %arg2: i32) -> (i32, i32) {
    %c0_i32 = arith.constant 0 : i32
    return %arg0, %arg1 : i32, i32
  }
}

module attributes {stable_mosaic.version = 11 : i64} {
  func.func @_head_kernel(%arg0: memref<2x8x32xbf16, #tpu.memory_space<vmem>>, %arg1: memref<2x8xf32, #tpu.memory_space<vmem>>, %arg2: memref<32x32xbf16, #tpu.memory_space<vmem>>, %arg3: memref<1x32xf32, #tpu.memory_space<vmem>>, %arg4: memref<32x128xbf16, #tpu.memory_space<vmem>>, %arg5: memref<2x32xf32, #tpu.memory_space<vmem>>, %arg6: memref<2x128xf32, #tpu.memory_space<vmem>>) attributes {dimension_semantics = [], scalar_prefetch = 0 : i64, scratch_operands = 0 : i64, tpu.core_type = #tpu.core_type<tc>} {
    %c0 = arith.constant 0 : index
    %c0_0 = arith.constant 0 : index
    %c0_1 = arith.constant 0 : index
    %0 = vector.load %arg0[%c0, %c0_0, %c0_1] : memref<2x8x32xbf16, #tpu.memory_space<vmem>>, vector<2x8x32xbf16>
    %c0_2 = arith.constant 0 : index
    %c0_3 = arith.constant 0 : index
    %1 = vector.load %arg1[%c0_2, %c0_3] : memref<2x8xf32, #tpu.memory_space<vmem>>, vector<2x8xf32>
    %2 = arith.truncf %1 : vector<2x8xf32> to vector<2x8xbf16>
    %3 = vector.shape_cast %2 : vector<2x8xbf16> to vector<2x1x8xbf16>
    "tpu.trace_start"() <{level = 10 : i32, message = "bqs,bsh->bqh"}> : () -> ()
    %cst = arith.constant dense<0.000000e+00> : vector<2x1x32xf32>
    %4 = tpu.matmul %3, %0, %cst {dimension_numbers = #tpu.dot_dimension_numbers<[2], [1], [1], [2], [0, 0, 0, 1, 1, 2], [0], [0]>} : vector<2x1x8xbf16>, vector<2x8x32xbf16>, vector<2x1x32xf32> -> vector<2x1x32xf32>
    "tpu.trace_stop"() : () -> ()
    %5 = vector.shape_cast %4 : vector<2x1x32xf32> to vector<2x32xf32>
    %cst_4 = arith.constant dense<0.000000e+00> : vector<2xf32>
    %6 = vector.multi_reduction <add>, %1, %cst_4 [1] : vector<2x8xf32> to vector<2xf32>
    %7 = vector.shape_cast %6 : vector<2xf32> to vector<2x1xf32>
    %cst_5 = arith.constant 9.99999997E-7 : f32
    %8 = vector.broadcast %cst_5 : f32 to vector<2x1xf32>
    %9 = arith.maximumf %7, %8 : vector<2x1xf32>
    %10 = vector.broadcast %9 : vector<2x1xf32> to vector<2x32xf32>
    %11 = arith.divf %5, %10 : vector<2x32xf32>
    %12 = arith.truncf %11 : vector<2x32xf32> to vector<2x32xbf16>
    %c0_6 = arith.constant 0 : index
    %c0_7 = arith.constant 0 : index
    %13 = vector.load %arg2[%c0_6, %c0_7] : memref<32x32xbf16, #tpu.memory_space<vmem>>, vector<32x32xbf16>
    %cst_8 = arith.constant dense<0.000000e+00> : vector<2x32xf32>
    %14 = tpu.matmul %12, %13, %cst_8 {dimension_numbers = #tpu.dot_dimension_numbers<[1], [0], [0], [1], [0, 0, 1, 1], [], []>} : vector<2x32xbf16>, vector<32x32xbf16>, vector<2x32xf32> -> vector<2x32xf32>
    %c0_9 = arith.constant 0 : index
    %c0_10 = arith.constant 0 : index
    %15 = vector.load %arg3[%c0_9, %c0_10] : memref<1x32xf32, #tpu.memory_space<vmem>>, vector<1x32xf32>
    %16 = vector.broadcast %15 : vector<1x32xf32> to vector<2x32xf32>
    %17 = arith.addf %14, %16 : vector<2x32xf32>
    %c0_11 = arith.constant 0 : index
    %c0_12 = arith.constant 0 : index
    %18 = vector.load %arg5[%c0_11, %c0_12] : memref<2x32xf32, #tpu.memory_space<vmem>>, vector<2x32xf32>
    tpu.vector_store %arg5[%c0_11, %c0_12], %17 {strides = array<i32>} : memref<2x32xf32, #tpu.memory_space<vmem>>, vector<2x32xf32>,
    %19 = arith.truncf %17 : vector<2x32xf32> to vector<2x32xbf16>
    %c0_13 = arith.constant 0 : index
    %c0_14 = arith.constant 0 : index
    %20 = vector.load %arg4[%c0_13, %c0_14] : memref<32x128xbf16, #tpu.memory_space<vmem>>, vector<32x128xbf16>
    %cst_15 = arith.constant dense<0.000000e+00> : vector<2x128xf32>
    %21 = tpu.matmul %19, %20, %cst_15 {dimension_numbers = #tpu.dot_dimension_numbers<[1], [0], [0], [1], [0, 0, 1, 1], [], []>} : vector<2x32xbf16>, vector<32x128xbf16>, vector<2x128xf32> -> vector<2x128xf32>
    %22 = tpu.iota {dimensions = array<i32: 1>} : vector<2x128xi32>
    %c16_i32 = arith.constant 16 : i32
    %23 = vector.broadcast %c16_i32 : i32 to vector<2x128xi32>
    %24 = arith.cmpi slt, %22, %23 : vector<2x128xi32>
    %cst_16 = arith.constant -1.000000e+30 : f32
    %25 = vector.broadcast %cst_16 : f32 to vector<2x128xf32>
    %26 = arith.select %24, %21, %25 : vector<2x128xi1>, vector<2x128xf32>
    %cst_17 = arith.constant dense<0xFF800000> : vector<2xf32>
    %27 = vector.multi_reduction <maximumf>, %26, %cst_17 [1] : vector<2x128xf32> to vector<2xf32>
    %28 = vector.shape_cast %27 : vector<2xf32> to vector<2x1xf32>
    %29 = vector.broadcast %28 : vector<2x1xf32> to vector<2x128xf32>
    %30 = arith.subf %26, %29 : vector<2x128xf32>
    %31 = math.exp %30 : vector<2x128xf32>
    %cst_18 = arith.constant dense<0.000000e+00> : vector<2xf32>
    %32 = vector.multi_reduction <add>, %31, %cst_18 [1] : vector<2x128xf32> to vector<2xf32>
    %33 = vector.shape_cast %32 : vector<2xf32> to vector<2x1xf32>
    %34 = math.log %33 : vector<2x1xf32>
    %35 = vector.broadcast %34 : vector<2x1xf32> to vector<2x128xf32>
    %36 = arith.subf %30, %35 : vector<2x128xf32>
    %c0_19 = arith.constant 0 : index
    %c0_20 = arith.constant 0 : index
    %37 = vector.load %arg6[%c0_19, %c0_20] : memref<2x128xf32, #tpu.memory_space<vmem>>, vector<2x128xf32>
    tpu.vector_store %arg6[%c0_19, %c0_20], %36 {strides = array<i32>} : memref<2x128xf32, #tpu.memory_space<vmem>>, vector<2x128xf32>,
    return
  }
}

</mosaic_0001>

<llo_original>
// kernel: hybert_forward.6
$region0: #{hybert_forward.6}
  #allocation0 [shape = 'u32[]', space=smem, size = 0x4, offset = 0x4, fixed_abs, tag = 'smem constant byte address 0x4 - core index']
  #allocation1 [shape = 'u32[144,128]{1,0:T(1,128)}', space=vmem, size = 0x12000, scoped, tag = 'internal scratch']
  #allocation2 [shape = 'f32[16,96]{1,0:T(8,128)}', space=vmem, size = 0x2000, scoped, tag = 'scratch operand']
  %s0 = inlined_call_operand.vmem [shape: bf16[16,32], index: 0, kind: input, shape index: {}]
  %s1 = inlined_call_operand.vmem [shape: bf16[32,96], index: 1, kind: input, shape index: {}]
  %s2 = inlined_call_operand.vmem [shape: f32[1,96], index: 2, kind: input, shape index: {}]
  %s3 = inlined_call_operand.vmem [shape: f32[16,96], index: 3, kind: output, shape index: {}]
  %s4 = sld [smem:[#allocation0]]
  $region30: #{hybert_forward.6} parent=0
    _
  %s6 = ssub.s32 1, %s4
  %s7 = scalar_select 0, %s6, %s4
  // Predicated region
  $region2: #{hybert_forward.6} parent=0 // pred_check
    _
  $region3: #{hybert_forward.6} parent=0 // pred_check_branch
    %9 = sbr.rel (0) target = $region5
  $region4: #{hybert_forward.6} parent=0 // pred_region
    _
  $region5: #{hybert_forward.6} parent=0 // pred_fallthru
    _
  // Predicated region
  $region6: #{hybert_forward.6} parent=0 // pred_check
    _
  $region7: #{hybert_forward.6} parent=0 // pred_check_branch
    %11 = sbr.rel (0) target = $region9
  $region8: #{hybert_forward.6} parent=0 // pred_region
    _
  $region9: #{hybert_forward.6} parent=0 // pred_fallthru
    _
  // Predicated region
  $region10: #{hybert_forward.6} parent=0 // pred_check
    _
  $region11: #{hybert_forward.6} parent=0 // pred_check_branch
    %13 = sbr.rel (0) target = $region13
  $region12: #{hybert_forward.6} parent=0 // pred_region
    _
  $region13: #{hybert_forward.6} parent=0 // pred_fallthru
    _
  %p15 = scmp.eq.s32.totalorder 0, 0
  // Predicated region
  $region14: #{hybert_forward.6} parent=0 // pred_check
    %p16 = pneg %p15
  $region15: #{hybert_forward.6} parent=0 // pred_check_branch
    %18 = sbr.rel (%p16) target = $region17
  $region16: #{hybert_forward.6} parent=0 // pred_region
    %vm19 = vcmask 785408
    %20 = vst.msk [vmem:[#allocation2] sm:$0xff] %vm19, 0.0
    %21 = vst.msk [vmem:[#allocation2 + $0x8] sm:$0xff] %vm19, 0.0
  $region17: #{hybert_forward.6} parent=0 // pred_fallthru
    _
  %v22 = vld [vmem:[#allocation2] sm:$0xff]
  %v23 = vld [vmem:[#allocation2 + $0x8] sm:$0xff]
  %v24 = vld [vmem:[%s0] sm:$0xf]
  %v25 = vld [vmem:[%s0 + $0x4] sm:$0xf]
  %v26 = vld [vmem:[%s1] sm:$0xf]
  %v27 = vld [vmem:[%s1 + $0x4] sm:$0xf]
  %v28 = vld [vmem:[%s1 + $0x8] sm:$0xf]
  %v29 = vld [vmem:[%s1 + $0xc] sm:$0xf]
  %v32 = vunpack.c.l.b16 %v24
  %v33 = vunpack.c.l.b16 %v25
  %v34 = vpack.c.b16 %v33, %v32
  %v39 = vunpack.c.l.b16 %v26
  %v40 = vunpack.c.l.b16 %v27
  %v41 = vunpack.c.l.b16 %v28
  %v42 = vunpack.c.l.b16 %v29
  %v43 = vpack.c.b16 %v40, %v39
  %v44 = vpack.c.b16 %v42, %v41
  %vm47 = vcmask 261120
  %v49 = vsel %vm47, %v34, 0
  %51 = vmatprep.subr.bf16.mxu0 0
  %52 = vmatpush1.bf16.msra.mxu0 0
  %53 = vmatprep.subr.bf16.mxu0 0
  %54 = vmatpush1.bf16.msra.mxu0 0
  %55 = vmatprep.subr.bf16.mxu0 0
  %56 = vmatpush1.bf16.msra.mxu0 0
  %57 = vmatprep.subr.bf16.mxu0 0
  %58 = vmatpush1.bf16.msra.mxu0 0
  %59 = vmatprep.subr.bf16.mxu0 0
  %60 = vmatpush1.bf16.msra.mxu0 0
  %61 = vmatprep.subr.bf16.mxu0 0
  %62 = vmatpush1.bf16.msra.mxu0 0
  %63 = vmatprep.subr.bf16.mxu0 0
  %64 = vmatpush1.bf16.msra.mxu0 %v44
  %65 = vmatprep.subr.bf16.mxu0 0
  %66 = vmatpush1.bf16.msra.mxu0 %v43
  %67 = vmatprep.subr.bf16.mxu0 0
  %68 = vmatpush2.bf16.msra.mxu0 0
  %69 = vmatprep.subr.bf16.mxu0 0
  %70 = vmatpush2.bf16.msra.mxu0 0
  %71 = vmatprep.subr.bf16.mxu0 0
  %72 = vmatpush2.bf16.msra.mxu0 0
  %73 = vmatprep.subr.bf16.mxu0 0
  %74 = vmatpush2.bf16.msra.mxu0 0
  %75 = vmatprep.subr.bf16.mxu0 0
  %76 = vmatpush2.bf16.msra.mxu0 0
  %77 = vmatprep.subr.bf16.mxu0 0
  %78 = vmatpush2.bf16.msra.mxu0 0
  %79 = vmatprep.subr.bf16.mxu0 0
  %80 = vmatpush2.bf16.msra.mxu0 0
  %81 = vmatprep.subr.bf16.mxu0 0
  %82 = vmatpush2.bf16.msra.mxu0 0
  %83 = vmatprep.mubr.bf16.mxu0 0
  %84 = vmatmul.mubr.bf16.gmra.mxu0 %v49
  %v85 = vpop.f32.mrf.mxu0
  %v86 = vadd.f32 0.0, %v85
  %v87 = vpop.f32.mrf.mxu0
  %v88 = vpop.f32.mrf.mxu0
  %v89 = vadd.f32 0.0, %v88
  %v90 = vpop.f32.mrf.mxu0
  %91 = vdwg.mxu0
  %v92 = vadd.f32 %v22, %v86
  %v93 = vadd.f32 %v23, %v89
  %vm94 = vcmask 785408
  %95 = vst.msk [vmem:[#allocation2] sm:$0xff] %vm94, %v92
  %96 = vst.msk [vmem:[#allocation2 + $0x8] sm:$0xff] %vm94, %v93
  // Predicated region
  $region18: #{hybert_forward.6} parent=0 // pred_check
    %p97 = pneg %p15
  $region19: #{hybert_forward.6} parent=0 // pred_check_branch
    %99 = sbr.rel (%p97) target = $region21
  $region20: #{hybert_forward.6} parent=0 // pred_region
    %v100 = vld [vmem:[#allocation2] sm:$0xff]
    %v101 = vld [vmem:[#allocation2 + $0x8] sm:$0xff]
    %v102 = vld [vmem:[%s2] sm:$0x1]
    %v104 = vlaneseq
    %v105 = vshrl.u32 %v104, 7
    %v106 = vsub.s32 0, %v105
    %v107 = vrot.slane %v102, %v106
    %v109 = vadd.f32 %v100, %v107
    %v110 = vadd.f32 %v101, %v107
    %111 = vst.msk [vmem:[%s3] sm:$0xff] %vm94, %v109
    %112 = vst.msk [vmem:[%s3 + $0x8] sm:$0xff] %vm94, %v110
  $region21: #{hybert_forward.6} parent=0 // pred_fallthru
    _
  // Predicated region
  $region22: #{hybert_forward.6} parent=0 // pred_check
    _
  $region23: #{hybert_forward.6} parent=0 // pred_check_branch
    %114 = sbr.rel (0) target = $region25
  $region24: #{hybert_forward.6} parent=0 // pred_region
    _
  $region25: #{hybert_forward.6} parent=0 // pred_fallthru
    _
  // Predicated region
  $region26: #{hybert_forward.6} parent=0 // pred_check
    _
  $region27: #{hybert_forward.6} parent=0 // pred_check_branch
    %116 = sbr.rel (0) target = $region29
  $region28: #{hybert_forward.6} parent=0 // pred_region
    _
  $region29: #{hybert_forward.6} parent=0 // pred_fallthru
    _

// kernel: hybert_forward.8
$region0: #{hybert_forward.8}
  #allocation0 [shape = 'u32[]', space=smem, size = 0x4, offset = 0x4, fixed_abs, tag = 'smem constant byte address 0x4 - core index']
  #allocation1 [shape = 'u32[144,128]{1,0:T(1,128)}', space=vmem, size = 0x12000, scoped, tag = 'internal scratch']
  #allocation2 [shape = 'f32[16,32]{1,0:T(8,128)}', space=vmem, size = 0x2000, scoped, tag = 'scratch operand']
  %s0 = inlined_call_operand.vmem [shape: bf16[16,32], index: 0, kind: input, shape index: {}]
  %s1 = inlined_call_operand.vmem [shape: bf16[32,32], index: 1, kind: input, shape index: {}]
  %s2 = inlined_call_operand.vmem [shape: f32[1,32], index: 2, kind: input, shape index: {}]
  %s3 = inlined_call_operand.vmem [shape: f32[16,32], index: 3, kind: output, shape index: {}]
  %s4 = sld [smem:[#allocation0]]
  $region30: #{hybert_forward.8} parent=0
    _
  %s6 = ssub.s32 1, %s4
  %s7 = scalar_select 0, %s6, %s4
  // Predicated region
  $region2: #{hybert_forward.8} parent=0 // pred_check
    _
  $region3: #{hybert_forward.8} parent=0 // pred_check_branch
    %9 = sbr.rel (0) target = $region5
  $region4: #{hybert_forward.8} parent=0 // pred_region
    _
  $region5: #{hybert_forward.8} parent=0 // pred_fallthru
    _
  // Predicated region
  $region6: #{hybert_forward.8} parent=0 // pred_check
    _
  $region7: #{hybert_forward.8} parent=0 // pred_check_branch
    %11 = sbr.rel (0) target = $region9
  $region8: #{hybert_forward.8} parent=0 // pred_region
    _
  $region9: #{hybert_forward.8} parent=0 // pred_fallthru
    _
  // Predicated region
  $region10: #{hybert_forward.8} parent=0 // pred_check
    _
  $region11: #{hybert_forward.8} parent=0 // pred_check_branch
    %13 = sbr.rel (0) target = $region13
  $region12: #{hybert_forward.8} parent=0 // pred_region
    _
  $region13: #{hybert_forward.8} parent=0 // pred_fallthru
    _
  %p15 = scmp.eq.s32.totalorder 0, 0
  // Predicated region
  $region14: #{hybert_forward.8} parent=0 // pred_check
    %p16 = pneg %p15
  $region15: #{hybert_forward.8} parent=0 // pred_check_branch
    %18 = sbr.rel (%p16) target = $region17
  $region16: #{hybert_forward.8} parent=0 // pred_region
    %vm19 = vcmask 261120
    %20 = vst.msk [vmem:[#allocation2] sm:$0xff] %vm19, 0.0
    %21 = vst.msk [vmem:[#allocation2 + $0x8] sm:$0xff] %vm19, 0.0
  $region17: #{hybert_forward.8} parent=0 // pred_fallthru
    _
  %v22 = vld [vmem:[#allocation2] sm:$0xff]
  %v23 = vld [vmem:[#allocation2 + $0x8] sm:$0xff]
  %v24 = vld [vmem:[%s0] sm:$0xf]
  %v25 = vld [vmem:[%s0 + $0x4] sm:$0xf]
  %v26 = vld [vmem:[%s1] sm:$0xf]
  %v27 = vld [vmem:[%s1 + $0x4] sm:$0xf]
  %v28 = vld [vmem:[%s1 + $0x8] sm:$0xf]
  %v29 = vld [vmem:[%s1 + $0xc] sm:$0xf]
  %v32 = vunpack.c.l.b16 %v24
  %v33 = vunpack.c.l.b16 %v25
  %v34 = vpack.c.b16 %v33, %v32
  %v39 = vunpack.c.l.b16 %v26
  %v40 = vunpack.c.l.b16 %v27
  %v41 = vunpack.c.l.b16 %v28
  %v42 = vunpack.c.l.b16 %v29
  %v43 = vpack.c.b16 %v40, %v39
  %v44 = vpack.c.b16 %v42, %v41
  %vm47 = vcmask 261120
  %v49 = vsel %vm47, %v34, 0
  %51 = vmatprep.subr.bf16.mxu0 0
  %52 = vmatpush1.bf16.msra.mxu0 0
  %53 = vmatprep.subr.bf16.mxu0 0
  %54 = vmatpush1.bf16.msra.mxu0 0
  %55 = vmatprep.subr.bf16.mxu0 0
  %56 = vmatpush1.bf16.msra.mxu0 0
  %57 = vmatprep.subr.bf16.mxu0 0
  %58 = vmatpush1.bf16.msra.mxu0 0
  %59 = vmatprep.subr.bf16.mxu0 0
  %60 = vmatpush1.bf16.msra.mxu0 0
  %61 = vmatprep.subr.bf16.mxu0 0
  %62 = vmatpush1.bf16.msra.mxu0 0
  %63 = vmatprep.subr.bf16.mxu0 0
  %64 = vmatpush1.bf16.msra.mxu0 %v44
  %65 = vmatprep.subr.bf16.mxu0 0
  %66 = vmatpush1.bf16.msra.mxu0 %v43
  %67 = vmatprep.subr.bf16.mxu0 0
  %68 = vmatpush2.bf16.msra.mxu0 0
  %69 = vmatprep.subr.bf16.mxu0 0
  %70 = vmatpush2.bf16.msra.mxu0 0
  %71 = vmatprep.subr.bf16.mxu0 0
  %72 = vmatpush2.bf16.msra.mxu0 0
  %73 = vmatprep.subr.bf16.mxu0 0
  %74 = vmatpush2.bf16.msra.mxu0 0
  %75 = vmatprep.subr.bf16.mxu0 0
  %76 = vmatpush2.bf16.msra.mxu0 0
  %77 = vmatprep.subr.bf16.mxu0 0
  %78 = vmatpush2.bf16.msra.mxu0 0
  %79 = vmatprep.subr.bf16.mxu0 0
  %80 = vmatpush2.bf16.msra.mxu0 0
  %81 = vmatprep.subr.bf16.mxu0 0
  %82 = vmatpush2.bf16.msra.mxu0 0
  %83 = vmatprep.mubr.bf16.mxu0 0
  %84 = vmatmul.mubr.bf16.gmra.mxu0 %v49
  %v85 = vpop.f32.mrf.mxu0
  %v86 = vadd.f32 0.0, %v85
  %v87 = vpop.f32.mrf.mxu0
  %v88 = vpop.f32.mrf.mxu0
  %v89 = vadd.f32 0.0, %v88
  %v90 = vpop.f32.mrf.mxu0
  %91 = vdwg.mxu0
  %v92 = vadd.f32 %v22, %v86
  %v93 = vadd.f32 %v23, %v89
  %94 = vst.msk [vmem:[#allocation2] sm:$0xff] %vm47, %v92
  %95 = vst.msk [vmem:[#allocation2 + $0x8] sm:$0xff] %vm47, %v93
  // Predicated region
  $region18: #{hybert_forward.8} parent=0 // pred_check
    %p96 = pneg %p15
  $region19: #{hybert_forward.8} parent=0 // pred_check_branch
    %98 = sbr.rel (%p96) target = $region21
  $region20: #{hybert_forward.8} parent=0 // pred_region
    %v99 = vld [vmem:[#allocation2] sm:$0xff]
    %v100 = vld [vmem:[#allocation2 + $0x8] sm:$0xff]
    %v101 = vld [vmem:[%s2] sm:$0x1]
    %v103 = vlaneseq
    %v104 = vshrl.u32 %v103, 7
    %v105 = vsub.s32 0, %v104
    %v106 = vrot.slane %v101, %v105
    %v108 = vadd.f32 %v99, %v106
    %v109 = vadd.f32 %v100, %v106
    %110 = vst.msk [vmem:[%s3] sm:$0xff] %vm47, %v108
    %111 = vst.msk [vmem:[%s3 + $0x8] sm:$0xff] %vm47, %v109
  $region21: #{hybert_forward.8} parent=0 // pred_fallthru
    _
  // Predicated region
  $region22: #{hybert_forward.8} parent=0 // pred_check
    _
  $region23: #{hybert_forward.8} parent=0 // pred_check_branch
    %113 = sbr.rel (0) target = $region25
  $region24: #{hybert_forward.8} parent=0 // pred_region
    _
  $region25: #{hybert_forward.8} parent=0 // pred_fallthru
    _
  // Predicated region
  $region26: #{hybert_forward.8} parent=0 // pred_check
    _
  $region27: #{hybert_forward.8} parent=0 // pred_check_branch
    %115 = sbr.rel (0) target = $region29
  $region28: #{hybert_forward.8} parent=0 // pred_region
    _
  $region29: #{hybert_forward.8} parent=0 // pred_fallthru
    _

// kernel: hybert_forward.7
$region0: #{hybert_forward.7}
  #allocation0 [shape = 'u32[]', space=smem, size = 0x4, offset = 0x4, fixed_abs, tag = 'smem constant byte address 0x4 - core index']
  #allocation1 [shape = 'u32[144,128]{1,0:T(1,128)}', space=vmem, size = 0x12000, scoped, tag = 'internal scratch']
  %s0 = inlined_call_operand.vmem [shape: f32[2,1,8], index: 0, kind: input, shape index: {}]
  %s1 = inlined_call_operand.vmem [shape: bf16[2,4,8,8], index: 1, kind: input, shape index: {}]
  %s2 = inlined_call_operand.vmem [shape: bf16[2,4,8,8], index: 2, kind: input, shape index: {}]
  %s3 = inlined_call_operand.vmem [shape: bf16[2,4,8,8], index: 3, kind: input, shape index: {}]
  %s4 = inlined_call_operand.vmem [shape: f32[2,4,8,8], index: 4, kind: output, shape index: {}]
  %s5 = sld [smem:[#allocation0]]
  $region49: #{hybert_forward.7} parent=0
    _
  %s7 = ssub.s32 1, %s5
  %s8 = scalar_select 0, %s7, %s5
  loop: start=0, step=1, limit=4
  $region2: #{hybert_forward.7} parent=0 // loop_pre_header
    _
  $region3: #{hybert_forward.7} parent=0 // loop_header
    %s10 = sphi 0, %s14
    %p11 = scmp.ge.s32.totalorder %s10, 4
    %s20 = sphi 0, %s22
    %s23 = sphi 0, %s20
    %s24 = sphi 0, %s23
    %s40 = sphi 0, %s24
    %s46 = sphi 0, %s48
    %s49 = sphi 0, %s46
    %s50 = sphi 0, %s49
    %s66 = sphi 0, %s50
    %s72 = sphi 0, %s74
    %s75 = sphi 0, %s72
    %s76 = sphi 0, %s75
    %s92 = sphi 0, %s76
    %s98 = sphi 0, %s100
    %s101 = sphi 0, %s98
    %s102 = sphi 0, %s101
    %s118 = sphi 0, %s102
    %s124 = sphi 0, %s126
    %s127 = sphi 0, %s124
    %s128 = sphi 0, %s127
    %s144 = sphi 0, %s128
  $region4: #{hybert_forward.7} parent=0 // loop_header_branch
    %13 = sbr.rel (%p11) target = $region8
  $region5: #{hybert_forward.7} parent=0 // loop_body
    %s15 = ssub.s32 %s10, 1
    %s16 = ssub.s32 %s10, 2
    %s17 = sadd.s32 %s10, 1
    %s18 = ssub.s32 %s10, %s17
    %p19 = scmp.eq.s32.totalorder %s18, 0
    %s21 = sadd.s32 %s20, 1
    %s22 = scalar_select %p19, %s20, %s21
    %p25 = pneg %p19
    %p26 = scmp.eq.s32.totalorder %s10, 1
    %p27 = por %p25, %p26
    %p28 = scmp.ne.s32.totalorder %s20, %s23
    %p29 = scmp.eq.s32.totalorder %s10, 0
    %p30 = por %p28, %p29
    %p31 = scmp.ne.s32.totalorder %s20, %s23
    %p32 = scmp.eq.s32.totalorder %s15, 1
    %p33 = por %p31, %p32
    %p34 = scmp.ne.s32.totalorder %s23, %s24
    %p35 = scmp.eq.s32.totalorder %s15, 0
    %p36 = por %p34, %p35
    %p37 = scmp.ne.s32.totalorder %s23, %s24
    %p38 = scmp.eq.s32.totalorder %s16, 1
    %p39 = por %p37, %p38
    %p41 = scmp.ne.s32.totalorder %s24, %s40
    %p42 = scmp.eq.s32.totalorder %s16, 0
    %p43 = por %p41, %p42
    %s44 = ssub.s32 %s10, %s17
    %p45 = scmp.eq.s32.totalorder %s44, 0
    %s47 = sadd.s32 %s46, 1
    %s48 = scalar_select %p45, %s46, %s47
    %p51 = pneg %p45
    %p52 = scmp.eq.s32.totalorder %s10, 1
    %p53 = por %p51, %p52
    %p54 = scmp.ne.s32.totalorder %s46, %s49
    %p55 = scmp.eq.s32.totalorder %s10, 0
    %p56 = por %p54, %p55
    %p57 = scmp.ne.s32.totalorder %s46, %s49
    %p58 = scmp.eq.s32.totalorder %s15, 1
    %p59 = por %p57, %p58
    %p60 = scmp.ne.s32.totalorder %s49, %s50
    %p61 = scmp.eq.s32.totalorder %s15, 0
    %p62 = por %p60, %p61
    %p63 = scmp.ne.s32.totalorder %s49, %s50
    %p64 = scmp.eq.s32.totalorder %s16, 1
    %p65 = por %p63, %p64
    %p67 = scmp.ne.s32.totalorder %s50, %s66
    %p68 = scmp.eq.s32.totalorder %s16, 0
    %p69 = por %p67, %p68
    %s70 = ssub.s32 %s10, %s17
    %p71 = scmp.eq.s32.totalorder %s70, 0
    %s73 = sadd.s32 %s72, 1
    %s74 = scalar_select %p71, %s72, %s73
    %p77 = pneg %p71
    %p78 = scmp.eq.s32.totalorder %s10, 1
    %p79 = por %p77, %p78
    %p80 = scmp.ne.s32.totalorder %s72, %s75
    %p81 = scmp.eq.s32.totalorder %s10, 0
    %p82 = por %p80, %p81
    %p83 = scmp.ne.s32.totalorder %s72, %s75
    %p84 = scmp.eq.s32.totalorder %s15, 1
    %p85 = por %p83, %p84
    %p86 = scmp.ne.s32.totalorder %s75, %s76
    %p87 = scmp.eq.s32.totalorder %s15, 0
    %p88 = por %p86, %p87
    %p89 = scmp.ne.s32.totalorder %s75, %s76
    %p90 = scmp.eq.s32.totalorder %s16, 1
    %p91 = por %p89, %p90
    %p93 = scmp.ne.s32.totalorder %s76, %s92
    %p94 = scmp.eq.s32.totalorder %s16, 0
    %p95 = por %p93, %p94
    %s96 = ssub.s32 %s10, %s17
    %p97 = scmp.eq.s32.totalorder %s96, 0
    %s99 = sadd.s32 %s98, 1
    %s100 = scalar_select %p97, %s98, %s99
    %p103 = pneg %p97
    %p104 = scmp.eq.s32.totalorder %s10, 1
    %p105 = por %p103, %p104
    %p106 = scmp.ne.s32.totalorder %s98, %s101
    %p107 = scmp.eq.s32.totalorder %s10, 0
    %p108 = por %p106, %p107
    %p109 = scmp.ne.s32.totalorder %s98, %s101
    %p110 = scmp.eq.s32.totalorder %s15, 1
    %p111 = por %p109, %p110
    %p112 = scmp.ne.s32.totalorder %s101, %s102
    %p113 = scmp.eq.s32.totalorder %s15, 0
    %p114 = por %p112, %p113
    %p115 = scmp.ne.s32.totalorder %s101, %s102
    %p116 = scmp.eq.s32.totalorder %s16, 1
    %p117 = por %p115, %p116
    %p119 = scmp.ne.s32.totalorder %s102, %s118
    %p120 = scmp.eq.s32.totalorder %s16, 0
    %p121 = por %p119, %p120
    %s122 = ssub.s32 %s10, %s17
    %p123 = scmp.eq.s32.totalorder %s122, 0
    %s125 = sadd.s32 %s124, 1
    %s126 = scalar_select %p123, %s124, %s125
    %p129 = pneg %p123
    %p130 = scmp.eq.s32.totalorder %s10, 1
    %p131 = por %p129, %p130
    %p132 = scmp.ne.s32.totalorder %s124, %s127
    %p133 = scmp.eq.s32.totalorder %s10, 0
    %p134 = por %p132, %p133
    %p135 = scmp.ne.s32.totalorder %s124, %s127
    %p136 = scmp.eq.s32.totalorder %s15, 1
    %p137 = por %p135, %p136
    %p138 = scmp.ne.s32.totalorder %s127, %s128
    %p139 = scmp.eq.s32.totalorder %s15, 0
    %p140 = por %p138, %p139
    %p141 = scmp.ne.s32.totalorder %s127, %s128
    %p142 = scmp.eq.s32.totalorder %s16, 1
    %p143 = por %p141, %p142
    %p145 = scmp.ne.s32.totalorder %s128, %s144
    %p146 = scmp.eq.s32.totalorder %s16, 0
    %p147 = por %p145, %p146
    %p148 = scmp.le.s32.totalorder 1, %s10
    %p149 = scmp.lt.s32.totalorder %s10, 3
    %p150 = pnand %p148, %p149
    %p151 = pneg %p150
    // Predicated region
    $region9: #{hybert_forward.7} parent=5 // pred_check
      _
    $region10: #{hybert_forward.7} parent=5 // pred_check_branch
      %153 = sbr.rel (%p150) target = $region12
    $region11: #{hybert_forward.7} parent=5 // pred_region
      %s154 = ssub.s32 %s10, 1
    $region12: #{hybert_forward.7} parent=5 // pred_fallthru
      _
    %p155 = scmp.lt.s32.totalorder %s10, 2
    // Predicated region
    $region13: #{hybert_forward.7} parent=5 // pred_check
      %p156 = pneg %p155
    $region14: #{hybert_forward.7} parent=5 // pred_check_branch
      %158 = sbr.rel (%p156) target = $region16
    $region15: #{hybert_forward.7} parent=5 // pred_region
      // Predicated region
      $region17: #{hybert_forward.7} parent=15 // pred_check
        %p159 = pneg %p30
      $region18: #{hybert_forward.7} parent=15 // pred_check_branch
        %161 = sbr.rel (%p159) target = $region20
      $region19: #{hybert_forward.7} parent=15 // pred_region
        %p162 = scmp.lt.s32.totalorder %s10, 1
        %s163 = scalar_select %p162, %s10, 1
        %s164 = scalar_lea.vmem %s0, %s163
      $region20: #{hybert_forward.7} parent=15 // pred_fallthru
        _
      // Predicated region
      $region21: #{hybert_forward.7} parent=15 // pred_check
        %p165 = pneg %p56
      $region22: #{hybert_forward.7} parent=15 // pred_check_branch
        %167 = sbr.rel (%p165) target = $region24
      $region23: #{hybert_forward.7} parent=15 // pred_region
        %p168 = scmp.lt.s32.totalorder %s10, 1
        %s169 = scalar_select %p168, %s10, 1
        %s170 = smul.addr %s169, 4
        %s171 = smul.addr %s170, 4
        %s172 = scalar_lea.vmem %s1, %s171
      $region24: #{hybert_forward.7} parent=15 // pred_fallthru
        _
      // Predicated region
      $region25: #{hybert_forward.7} parent=15 // pred_check
        %p173 = pneg %p82
      $region26: #{hybert_forward.7} parent=15 // pred_check_branch
        %175 = sbr.rel (%p173) target = $region28
      $region27: #{hybert_forward.7} parent=15 // pred_region
        %p176 = scmp.lt.s32.totalorder %s10, 1
        %s177 = scalar_select %p176, %s10, 1
        %s178 = smul.addr %s177, 4
        %s179 = smul.addr %s178, 4
        %s180 = scalar_lea.vmem %s2, %s179
      $region28: #{hybert_forward.7} parent=15 // pred_fallthru
        _
      // Predicated region
      $region29: #{hybert_forward.7} parent=15 // pred_check
        %p181 = pneg %p108
      $region30: #{hybert_forward.7} parent=15 // pred_check_branch
        %183 = sbr.rel (%p181) target = $region32
      $region31: #{hybert_forward.7} parent=15 // pred_region
        %p184 = scmp.lt.s32.totalorder %s10, 1
        %s185 = scalar_select %p184, %s10, 1
        %s186 = smul.addr %s185, 4
        %s187 = smul.addr %s186, 4
        %s188 = scalar_lea.vmem %s3, %s187
      $region32: #{hybert_forward.7} parent=15 // pred_fallthru
        _
    $region16: #{hybert_forward.7} parent=5 // pred_fallthru
      _
    %p189 = scmp.le.s32.totalorder 1, %s10
    %p190 = scmp.lt.s32.totalorder %s10, 3
    %p191 = pnand %p189, %p190
    %p192 = pneg %p191
    // Predicated region
    $region33: #{hybert_forward.7} parent=5 // pred_check
      _
    $region34: #{hybert_forward.7} parent=5 // pred_check_branch
      %194 = sbr.rel (%p191) target = $region36
    $region35: #{hybert_forward.7} parent=5 // pred_region
      %s195 = ssub.s32 %s10, 1
      %p196 = scmp.lt.s32.totalorder %s15, 1
      %s197 = scalar_select %p196, %s15, 1
      %s198 = scalar_lea.vmem %s0, %s197
      %p199 = pneg %p36
      %p200 = pneg %p33
      %p201 = scmp.lt.s32.totalorder %s15, 1
      %s202 = scalar_select %p201, %s15, 1
      %s203 = smul.addr %s202, 4
      %s204 = smul.addr %s203, 4
      %s205 = scalar_lea.vmem %s1, %s204
      %p206 = pneg %p62
      %p207 = pneg %p59
      %p208 = scmp.lt.s32.totalorder %s15, 1
      %s209 = scalar_select %p208, %s15, 1
      %s210 = smul.addr %s209, 4
      %s211 = smul.addr %s210, 4
      %s212 = scalar_lea.vmem %s2, %s211
      %p213 = pneg %p88
      %p214 = pneg %p85
      %p215 = scmp.lt.s32.totalorder %s15, 1
      %s216 = scalar_select %p215, %s15, 1
      %s217 = smul.addr %s216, 4
      %s218 = smul.addr %s217, 4
      %s219 = scalar_lea.vmem %s3, %s218
      %p220 = pneg %p114
      %p221 = pneg %p111
      %p222 = pneg %p140
      %p223 = pneg %p137
      %p224 = scmp.lt.s32.totalorder %s15, 1
      %s225 = scalar_select %p224, %s15, 1
      %s226 = smul.addr %s225, 4
      %s227 = smul.addr %s226, 8
      %s228 = scalar_lea.vmem %s4, %s227
      %p229 = scmp.lt.s32.totalorder %s15, 1
      %s230 = scalar_select %p229, %s15, 1
      %s231 = scalar_lea.vmem %s0, %s230
      %p232 = scmp.lt.s32.totalorder %s15, 1
      %s233 = scalar_select %p232, %s15, 1
      %s234 = smul.addr %s233, 4
      %s235 = smul.addr %s234, 4
      %s236 = scalar_lea.vmem %s1, %s235
      %p237 = scmp.lt.s32.totalorder %s15, 1
      %s238 = scalar_select %p237, %s15, 1
      %s239 = smul.addr %s238, 4
      %s240 = smul.addr %s239, 4
      %s241 = scalar_lea.vmem %s2, %s240
      %p242 = scmp.lt.s32.totalorder %s15, 1
      %s243 = scalar_select %p242, %s15, 1
      %s244 = smul.addr %s243, 4
      %s245 = smul.addr %s244, 4
      %s246 = scalar_lea.vmem %s3, %s245
      %p247 = scmp.lt.s32.totalorder %s15, 1
      %s248 = scalar_select %p247, %s15, 1
      %s249 = smul.addr %s248, 4
      %s250 = smul.addr %s249, 8
      %s251 = scalar_lea.vmem %s4, %s250
      %v253 = vld [vmem:[%s236] sm:$0xf]
      %v254 = vld [vmem:[%s236 + $0x4] sm:$0xf]
      %v255 = vld [vmem:[%s236 + $0x8] sm:$0xf]
      %v256 = vld [vmem:[%s236 + $0xc] sm:$0xf]
      %v257 = vld [vmem:[%s241] sm:$0xf]
      %v258 = vld [vmem:[%s241 + $0x4] sm:$0xf]
      %v259 = vld [vmem:[%s241 + $0x8] sm:$0xf]
      %v260 = vld [vmem:[%s241 + $0xc] sm:$0xf]
      %v261 = vld [vmem:[%s246] sm:$0xf]
      %v262 = vld [vmem:[%s246 + $0x4] sm:$0xf]
      %v263 = vld [vmem:[%s246 + $0x8] sm:$0xf]
      %v264 = vld [vmem:[%s246 + $0xc] sm:$0xf]
      %vm265 = vcmask 64512
      %v267 = vsel %vm265, %v253, 0
      %v270 = vsel %vm265, %v257, 0
      %272 = vmatprep.subr.bf16.mxu0 0
      %273 = vmatpush1.bf16.xpose.msra.mxu0 0
      %274 = vmatprep.subr.bf16.mxu0 0
      %275 = vmatpush1.bf16.xpose.msra.mxu0 0
      %276 = vmatprep.subr.bf16.mxu0 0
      %277 = vmatpush1.bf16.xpose.msra.mxu0 0
      %278 = vmatprep.subr.bf16.mxu0 0
      %279 = vmatpush1.bf16.xpose.msra.mxu0 0
      %280 = vmatprep.subr.bf16.mxu0 0
      %281 = vmatpush1.bf16.xpose.msra.mxu0 0
      %282 = vmatprep.subr.bf16.mxu0 0
      %283 = vmatpush1.bf16.xpose.msra.mxu0 0
      %284 = vmatprep.subr.bf16.mxu0 0
      %285 = vmatpush1.bf16.xpose.msra.mxu0 0
      %286 = vmatprep.subr.bf16.mxu0 0
      %287 = vmatpush1.bf16.xpose.msra.mxu0 %v270
      %288 = vmatprep.subr.bf16.mxu0 0
      %289 = vmatpush2.bf16.xpose.msra.mxu0 0
      %290 = vmatprep.subr.bf16.mxu0 0
      %291 = vmatpush2.bf16.xpose.msra.mxu0 0
      %292 = vmatprep.subr.bf16.mxu0 0
      %293 = vmatpush2.bf16.xpose.msra.mxu0 0
      %294 = vmatprep.subr.bf16.mxu0 0
      %295 = vmatpush2.bf16.xpose.msra.mxu0 0
      %296 = vmatprep.subr.bf16.mxu0 0
      %297 = vmatpush2.bf16.xpose.msra.mxu0 0
      %298 = vmatprep.subr.bf16.mxu0 0
      %299 = vmatpush2.bf16.xpose.msra.mxu0 0
      %300 = vmatprep.subr.bf16.mxu0 0
      %301 = vmatpush2.bf16.xpose.msra.mxu0 0
      %302 = vmatprep.subr.bf16.mxu0 0
      %303 = vmatpush2.bf16.xpose.msra.mxu0 0
      %304 = vmatprep.mubr.bf16.mxu0 0
      %305 = vmatmul.mubr.bf16.gmra.mxu0 %v267
      %v306 = vpop.f32.mrf.mxu0
      %v307 = vadd.f32 0.0, %v306
      %v308 = vpop.f32.mrf.mxu0
      %v309 = vpop.f32.mrf.mxu0
      %v310 = vpop.f32.mrf.mxu0
      %311 = vdwg.mxu0
      %v313 = vsel %vm265, %v254, 0
      %v316 = vsel %vm265, %v258, 0
      %318 = vmatprep.subr.bf16.mxu0 0
      %319 = vmatpush1.bf16.xpose.msra.mxu0 0
      %320 = vmatprep.subr.bf16.mxu0 0
      %321 = vmatpush1.bf16.xpose.msra.mxu0 0
      %322 = vmatprep.subr.bf16.mxu0 0
      %323 = vmatpush1.bf16.xpose.msra.mxu0 0
      %324 = vmatprep.subr.bf16.mxu0 0
      %325 = vmatpush1.bf16.xpose.msra.mxu0 0
      %326 = vmatprep.subr.bf16.mxu0 0
      %327 = vmatpush1.bf16.xpose.msra.mxu0 0
      %328 = vmatprep.subr.bf16.mxu0 0
      %329 = vmatpush1.bf16.xpose.msra.mxu0 0
      %330 = vmatprep.subr.bf16.mxu0 0
      %331 = vmatpush1.bf16.xpose.msra.mxu0 0
      %332 = vmatprep.subr.bf16.mxu0 0
      %333 = vmatpush1.bf16.xpose.msra.mxu0 %v316
      %334 = vmatprep.subr.bf16.mxu0 0
      %335 = vmatpush2.bf16.xpose.msra.mxu0 0
      %336 = vmatprep.subr.bf16.mxu0 0
      %337 = vmatpush2.bf16.xpose.msra.mxu0 0
      %338 = vmatprep.subr.bf16.mxu0 0
      %339 = vmatpush2.bf16.xpose.msra.mxu0 0
      %340 = vmatprep.subr.bf16.mxu0 0
      %341 = vmatpush2.bf16.xpose.msra.mxu0 0
      %342 = vmatprep.subr.bf16.mxu0 0
      %343 = vmatpush2.bf16.xpose.msra.mxu0 0
      %344 = vmatprep.subr.bf16.mxu0 0
      %345 = vmatpush2.bf16.xpose.msra.mxu0 0
      %346 = vmatprep.subr.bf16.mxu0 0
      %347 = vmatpush2.bf16.xpose.msra.mxu0 0
      %348 = vmatprep.subr.bf16.mxu0 0
      %349 = vmatpush2.bf16.xpose.msra.mxu0 0
      %350 = vmatprep.mubr.bf16.mxu0 0
      %351 = vmatmul.mubr.bf16.gmra.mxu0 %v313
      %v352 = vpop.f32.mrf.mxu0
      %v353 = vadd.f32 0.0, %v352
      %v354 = vpop.f32.mrf.mxu0
      %v355 = vpop.f32.mrf.mxu0
      %v356 = vpop.f32.mrf.mxu0
      %357 = vdwg.mxu0
      %v359 = vsel %vm265, %v255, 0
      %v362 = vsel %vm265, %v259, 0
      %364 = vmatprep.subr.bf16.mxu0 0
      %365 = vmatpush1.bf16.xpose.msra.mxu0 0
      %366 = vmatprep.subr.bf16.mxu0 0
      %367 = vmatpush1.bf16.xpose.msra.mxu0 0
      %368 = vmatprep.subr.bf16.mxu0 0
      %369 = vmatpush1.bf16.xpose.msra.mxu0 0
      %370 = vmatprep.subr.bf16.mxu0 0
      %371 = vmatpush1.bf16.xpose.msra.mxu0 0
      %372 = vmatprep.subr.bf16.mxu0 0
      %373 = vmatpush1.bf16.xpose.msra.mxu0 0
      %374 = vmatprep.subr.bf16.mxu0 0
      %375 = vmatpush1.bf16.xpose.msra.mxu0 0
      %376 = vmatprep.subr.bf16.mxu0 0
      %377 = vmatpush1.bf16.xpose.msra.mxu0 0
      %378 = vmatprep.subr.bf16.mxu0 0
      %379 = vmatpush1.bf16.xpose.msra.mxu0 %v362
      %380 = vmatprep.subr.bf16.mxu0 0
      %381 = vmatpush2.bf16.xpose.msra.mxu0 0
      %382 = vmatprep.subr.bf16.mxu0 0
      %383 = vmatpush2.bf16.xpose.msra.mxu0 0
      %384 = vmatprep.subr.bf16.mxu0 0
      %385 = vmatpush2.bf16.xpose.msra.mxu0 0
      %386 = vmatprep.subr.bf16.mxu0 0
      %387 = vmatpush2.bf16.xpose.msra.mxu0 0
      %388 = vmatprep.subr.bf16.mxu0 0
      %389 = vmatpush2.bf16.xpose.msra.mxu0 0
      %390 = vmatprep.subr.bf16.mxu0 0
      %391 = vmatpush2.bf16.xpose.msra.mxu0 0
      %392 = vmatprep.subr.bf16.mxu0 0
      %393 = vmatpush2.bf16.xpose.msra.mxu0 0
      %394 = vmatprep.subr.bf16.mxu0 0
      %395 = vmatpush2.bf16.xpose.msra.mxu0 0
      %396 = vmatprep.mubr.bf16.mxu0 0
      %397 = vmatmul.mubr.bf16.gmra.mxu0 %v359
      %v398 = vpop.f32.mrf.mxu0
      %v399 = vadd.f32 0.0, %v398
      %v400 = vpop.f32.mrf.mxu0
      %v401 = vpop.f32.mrf.mxu0
      %v402 = vpop.f32.mrf.mxu0
      %403 = vdwg.mxu0
      %v405 = vsel %vm265, %v256, 0
      %v408 = vsel %vm265, %v260, 0
      %410 = vmatprep.subr.bf16.mxu0 0
      %411 = vmatpush1.bf16.xpose.msra.mxu0 0
      %412 = vmatprep.subr.bf16.mxu0 0
      %413 = vmatpush1.bf16.xpose.msra.mxu0 0
      %414 = vmatprep.subr.bf16.mxu0 0
      %415 = vmatpush1.bf16.xpose.msra.mxu0 0
      %416 = vmatprep.subr.bf16.mxu0 0
      %417 = vmatpush1.bf16.xpose.msra.mxu0 0
      %418 = vmatprep.subr.bf16.mxu0 0
      %419 = vmatpush1.bf16.xpose.msra.mxu0 0
      %420 = vmatprep.subr.bf16.mxu0 0
      %421 = vmatpush1.bf16.xpose.msra.mxu0 0
      %422 = vmatprep.subr.bf16.mxu0 0
      %423 = vmatpush1.bf16.xpose.msra.mxu0 0
      %424 = vmatprep.subr.bf16.mxu0 0
      %425 = vmatpush1.bf16.xpose.msra.mxu0 %v408
      %426 = vmatprep.subr.bf16.mxu0 0
      %427 = vmatpush2.bf16.xpose.msra.mxu0 0
      %428 = vmatprep.subr.bf16.mxu0 0
      %429 = vmatpush2.bf16.xpose.msra.mxu0 0
      %430 = vmatprep.subr.bf16.mxu0 0
      %431 = vmatpush2.bf16.xpose.msra.mxu0 0
      %432 = vmatprep.subr.bf16.mxu0 0
      %433 = vmatpush2.bf16.xpose.msra.mxu0 0
      %434 = vmatprep.subr.bf16.mxu0 0
      %435 = vmatpush2.bf16.xpose.msra.mxu0 0
      %436 = vmatprep.subr.bf16.mxu0 0
      %437 = vmatpush2.bf16.xpose.msra.mxu0 0
      %438 = vmatprep.subr.bf16.mxu0 0
      %439 = vmatpush2.bf16.xpose.msra.mxu0 0
      %440 = vmatprep.subr.bf16.mxu0 0
      %441 = vmatpush2.bf16.xpose.msra.mxu0 0
      %442 = vmatprep.mubr.bf16.mxu0 0
      %443 = vmatmul.mubr.bf16.gmra.mxu0 %v405
      %v444 = vpop.f32.mrf.mxu0
      %v445 = vadd.f32 0.0, %v444
      %v446 = vpop.f32.mrf.mxu0
      %v447 = vpop.f32.mrf.mxu0
      %v448 = vpop.f32.mrf.mxu0
      %449 = vdwg.mxu0
      %v450 = vmul.f32 %v307, 0.35355338
      %v451 = vmul.f32 %v353, 0.35355338
      %v452 = vmul.f32 %v399, 0.35355338
      %v453 = vmul.f32 %v445, 0.35355338
      %v454 = vld [vmem:[%s231] sm:$0x1]
      %v456 = vlaneseq
      %v457 = vshrl.u32 %v456, 7
      %v458 = vsub.s32 0, %v457
      %v459 = vrot.slane %v454, %v458
      %v461 = vadd.f32 %v450, %v459
      %v462 = vadd.f32 %v451, %v459
      %v463 = vadd.f32 %v452, %v459
      %v464 = vadd.f32 %v453, %v459
      %v465 = vsel %vm265, %v461, -inf
      %466 = vmax.xlane.f32.xlu0 %v465
      %v467 = vpop.xlane.xlu0 %466
      %v468 = vsel %vm265, %v462, -inf
      %469 = vmax.xlane.f32.xlu0 %v468
      %v470 = vpop.xlane.xlu0 %469
      %v471 = vsel %vm265, %v463, -inf
      %472 = vmax.xlane.f32.xlu0 %v471
      %v473 = vpop.xlane.xlu0 %472
      %v474 = vsel %vm265, %v464, -inf
      %475 = vmax.xlane.f32.xlu0 %v474
      %v476 = vpop.xlane.xlu0 %475
      %v477 = vsub.f32 %v461, %v467
      %v478 = vsub.f32 %v462, %v470
      %v479 = vsub.f32 %v463, %v473
      %v480 = vsub.f32 %v464, %v476
      %v481 = vmul.f32 %v477, 1.442695
      %v482 = vpow.pop %v481
      %v483 = vmul.f32 %v478, 1.442695
      %v484 = vpow.pop %v483
      %v485 = vmul.f32 %v479, 1.442695
      %v486 = vpow.pop %v485
      %v487 = vmul.f32 %v480, 1.442695
      %v488 = vpow.pop %v487
      %v489 = vsel %vm265, %v482, 0.0
      %490 = vadd.xlane.f32.xlu0 %v489
      %v491 = vpop.xlane.xlu0 %490
      %v492 = vsel %vm265, %v484, 0.0
      %493 = vadd.xlane.f32.xlu0 %v492
      %v494 = vpop.xlane.xlu0 %493
      %v495 = vsel %vm265, %v486, 0.0
      %496 = vadd.xlane.f32.xlu0 %v495
      %v497 = vpop.xlane.xlu0 %496
      %v498 = vsel %vm265, %v488, 0.0
      %499 = vadd.xlane.f32.xlu0 %v498
      %v500 = vpop.xlane.xlu0 %499
      %v501 = vrcp.pop %v491
      %v502 = vmul.f32 %v482, %v501
      %v503 = vrcp.pop %v494
      %v504 = vmul.f32 %v484, %v503
      %v505 = vrcp.pop %v497
      %v506 = vmul.f32 %v486, %v505
      %v507 = vrcp.pop %v500
      %v508 = vmul.f32 %v488, %v507
      %v509 = vpack.c.bf16 %v502, %v502
      %v510 = vpack.c.bf16 %v504, %v504
      %v511 = vpack.c.bf16 %v506, %v506
      %v512 = vpack.c.bf16 %v508, %v508
      %v514 = vsel %vm265, %v509, 0
      %vm516 = vcmask 1043456
      %v518 = vsel %vm516, %v261, 0
      %520 = vmatprep.subr.bf16.mxu0 0
      %521 = vmatpush1.bf16.msra.mxu0 0
      %522 = vmatprep.subr.bf16.mxu0 0
      %523 = vmatpush1.bf16.msra.mxu0 0
      %524 = vmatprep.subr.bf16.mxu0 0
      %525 = vmatpush1.bf16.msra.mxu0 0
      %526 = vmatprep.subr.bf16.mxu0 0
      %527 = vmatpush1.bf16.msra.mxu0 0
      %528 = vmatprep.subr.bf16.mxu0 0
      %529 = vmatpush1.bf16.msra.mxu0 0
      %530 = vmatprep.subr.bf16.mxu0 0
      %531 = vmatpush1.bf16.msra.mxu0 0
      %532 = vmatprep.subr.bf16.mxu0 0
      %533 = vmatpush1.bf16.msra.mxu0 0
      %534 = vmatprep.subr.bf16.mxu0 0
      %535 = vmatpush1.bf16.msra.mxu0 %v518
      %536 = vmatprep.subr.bf16.mxu0 0
      %537 = vmatpush2.bf16.msra.mxu0 0
      %538 = vmatprep.subr.bf16.mxu0 0
      %539 = vmatpush2.bf16.msra.mxu0 0
      %540 = vmatprep.subr.bf16.mxu0 0
      %541 = vmatpush2.bf16.msra.mxu0 0
      %542 = vmatprep.subr.bf16.mxu0 0
      %543 = vmatpush2.bf16.msra.mxu0 0
      %544 = vmatprep.subr.bf16.mxu0 0
      %545 = vmatpush2.bf16.msra.mxu0 0
      %546 = vmatprep.subr.bf16.mxu0 0
      %547 = vmatpush2.bf16.msra.mxu0 0
      %548 = vmatprep.subr.bf16.mxu0 0
      %549 = vmatpush2.bf16.msra.mxu0 0
      %550 = vmatprep.subr.bf16.mxu0 0
      %551 = vmatpush2.bf16.msra.mxu0 0
      %552 = vmatprep.mubr.bf16.mxu0 0
      %553 = vmatmul.mubr.bf16.gmra.mxu0 %v514
      %v554 = vpop.f32.mrf.mxu0
      %v555 = vadd.f32 0.0, %v554
      %v556 = vpop.f32.mrf.mxu0
      %v557 = vpop.f32.mrf.mxu0
      %v558 = vpop.f32.mrf.mxu0
      %559 = vdwg.mxu0
      %v561 = vsel %vm265, %v510, 0
      %v564 = vsel %vm516, %v262, 0
      %566 = vmatprep.subr.bf16.mxu0 0
      %567 = vmatpush1.bf16.msra.mxu0 0
      %568 = vmatprep.subr.bf16.mxu0 0
      %569 = vmatpush1.bf16.msra.mxu0 0
      %570 = vmatprep.subr.bf16.mxu0 0
      %571 = vmatpush1.bf16.msra.mxu0 0
      %572 = vmatprep.subr.bf16.mxu0 0
      %573 = vmatpush1.bf16.msra.mxu0 0
      %574 = vmatprep.subr.bf16.mxu0 0
      %575 = vmatpush1.bf16.msra.mxu0 0
      %576 = vmatprep.subr.bf16.mxu0 0
      %577 = vmatpush1.bf16.msra.mxu0 0
      %578 = vmatprep.subr.bf16.mxu0 0
      %579 = vmatpush1.bf16.msra.mxu0 0
      %580 = vmatprep.subr.bf16.mxu0 0
      %581 = vmatpush1.bf16.msra.mxu0 %v564
      %582 = vmatprep.subr.bf16.mxu0 0
      %583 = vmatpush2.bf16.msra.mxu0 0
      %584 = vmatprep.subr.bf16.mxu0 0
      %585 = vmatpush2.bf16.msra.mxu0 0
      %586 = vmatprep.subr.bf16.mxu0 0
      %587 = vmatpush2.bf16.msra.mxu0 0
      %588 = vmatprep.subr.bf16.mxu0 0
      %589 = vmatpush2.bf16.msra.mxu0 0
      %590 = vmatprep.subr.bf16.mxu0 0
      %591 = vmatpush2.bf16.msra.mxu0 0
      %592 = vmatprep.subr.bf16.mxu0 0
      %593 = vmatpush2.bf16.msra.mxu0 0
      %594 = vmatprep.subr.bf16.mxu0 0
      %595 = vmatpush2.bf16.msra.mxu0 0
      %596 = vmatprep.subr.bf16.mxu0 0
      %597 = vmatpush2.bf16.msra.mxu0 0
      %598 = vmatprep.mubr.bf16.mxu0 0
      %599 = vmatmul.mubr.bf16.gmra.mxu0 %v561
      %v600 = vpop.f32.mrf.mxu0
      %v601 = vadd.f32 0.0, %v600
      %v602 = vpop.f32.mrf.mxu0
      %v603 = vpop.f32.mrf.mxu0
      %v604 = vpop.f32.mrf.mxu0
      %605 = vdwg.mxu0
      %v607 = vsel %vm265, %v511, 0
      %v610 = vsel %vm516, %v263, 0
      %612 = vmatprep.subr.bf16.mxu0 0
      %613 = vmatpush1.bf16.msra.mxu0 0
      %614 = vmatprep.subr.bf16.mxu0 0
      %615 = vmatpush1.bf16.msra.mxu0 0
      %616 = vmatprep.subr.bf16.mxu0 0
      %617 = vmatpush1.bf16.msra.mxu0 0
      %618 = vmatprep.subr.bf16.mxu0 0
      %619 = vmatpush1.bf16.msra.mxu0 0
      %620 = vmatprep.subr.bf16.mxu0 0
      %621 = vmatpush1.bf16.msra.mxu0 0
      %622 = vmatprep.subr.bf16.mxu0 0
      %623 = vmatpush1.bf16.msra.mxu0 0
      %624 = vmatprep.subr.bf16.mxu0 0
      %625 = vmatpush1.bf16.msra.mxu0 0
      %626 = vmatprep.subr.bf16.mxu0 0
      %627 = vmatpush1.bf16.msra.mxu0 %v610
      %628 = vmatprep.subr.bf16.mxu0 0
      %629 = vmatpush2.bf16.msra.mxu0 0
      %630 = vmatprep.subr.bf16.mxu0 0
      %631 = vmatpush2.bf16.msra.mxu0 0
      %632 = vmatprep.subr.bf16.mxu0 0
      %633 = vmatpush2.bf16.msra.mxu0 0
      %634 = vmatprep.subr.bf16.mxu0 0
      %635 = vmatpush2.bf16.msra.mxu0 0
      %636 = vmatprep.subr.bf16.mxu0 0
      %637 = vmatpush2.bf16.msra.mxu0 0
      %638 = vmatprep.subr.bf16.mxu0 0
      %639 = vmatpush2.bf16.msra.mxu0 0
      %640 = vmatprep.subr.bf16.mxu0 0
      %641 = vmatpush2.bf16.msra.mxu0 0
      %642 = vmatprep.subr.bf16.mxu0 0
      %643 = vmatpush2.bf16.msra.mxu0 0
      %644 = vmatprep.mubr.bf16.mxu0 0
      %645 = vmatmul.mubr.bf16.gmra.mxu0 %v607
      %v646 = vpop.f32.mrf.mxu0
      %v647 = vadd.f32 0.0, %v646
      %v648 = vpop.f32.mrf.mxu0
      %v649 = vpop.f32.mrf.mxu0
      %v650 = vpop.f32.mrf.mxu0
      %651 = vdwg.mxu0
      %v653 = vsel %vm265, %v512, 0
      %v656 = vsel %vm516, %v264, 0
      %658 = vmatprep.subr.bf16.mxu0 0
      %659 = vmatpush1.bf16.msra.mxu0 0
      %660 = vmatprep.subr.bf16.mxu0 0
      %661 = vmatpush1.bf16.msra.mxu0 0
      %662 = vmatprep.subr.bf16.mxu0 0
      %663 = vmatpush1.bf16.msra.mxu0 0
      %664 = vmatprep.subr.bf16.mxu0 0
      %665 = vmatpush1.bf16.msra.mxu0 0
      %666 = vmatprep.subr.bf16.mxu0 0
      %667 = vmatpush1.bf16.msra.mxu0 0
      %668 = vmatprep.subr.bf16.mxu0 0
      %669 = vmatpush1.bf16.msra.mxu0 0
      %670 = vmatprep.subr.bf16.mxu0 0
      %671 = vmatpush1.bf16.msra.mxu0 0
      %672 = vmatprep.subr.bf16.mxu0 0
      %673 = vmatpush1.bf16.msra.mxu0 %v656
      %674 = vmatprep.subr.bf16.mxu0 0
      %675 = vmatpush2.bf16.msra.mxu0 0
      %676 = vmatprep.subr.bf16.mxu0 0
      %677 = vmatpush2.bf16.msra.mxu0 0
      %678 = vmatprep.subr.bf16.mxu0 0
      %679 = vmatpush2.bf16.msra.mxu0 0
      %680 = vmatprep.subr.bf16.mxu0 0
      %681 = vmatpush2.bf16.msra.mxu0 0
      %682 = vmatprep.subr.bf16.mxu0 0
      %683 = vmatpush2.bf16.msra.mxu0 0
      %684 = vmatprep.subr.bf16.mxu0 0
      %685 = vmatpush2.bf16.msra.mxu0 0
      %686 = vmatprep.subr.bf16.mxu0 0
      %687 = vmatpush2.bf16.msra.mxu0 0
      %688 = vmatprep.subr.bf16.mxu0 0
      %689 = vmatpush2.bf16.msra.mxu0 0
      %690 = vmatprep.mubr.bf16.mxu0 0
      %691 = vmatmul.mubr.bf16.gmra.mxu0 %v653
      %v692 = vpop.f32.mrf.mxu0
      %v693 = vadd.f32 0.0, %v692
      %v694 = vpop.f32.mrf.mxu0
      %v695 = vpop.f32.mrf.mxu0
      %v696 = vpop.f32.mrf.mxu0
      %697 = vdwg.mxu0
      %698 = vst.msk [vmem:[%s251] sm:$0xff] %vm265, %v555
      %699 = vst.msk [vmem:[%s251 + $0x8] sm:$0xff] %vm265, %v601
      %700 = vst.msk [vmem:[%s251 + $0x10] sm:$0xff] %vm265, %v647
      %701 = vst.msk [vmem:[%s251 + $0x18] sm:$0xff] %vm265, %v693
      %p702 = scmp.lt.s32.totalorder %s15, 1
      %s703 = scalar_select %p702, %s15, 1
      %s704 = smul.addr %s703, 4
      %s705 = smul.addr %s704, 8
      %s706 = scalar_lea.vmem %s4, %s705
      // Predicated region
      $region37: #{hybert_forward.7} parent=35 // pred_check
        %p707 = pneg %p137
      $region38: #{hybert_forward.7} parent=35 // pred_check_branch
        %709 = sbr.rel (%p707) target = $region40
      $region39: #{hybert_forward.7} parent=35 // pred_region
        _
      $region40: #{hybert_forward.7} parent=35 // pred_fallthru
        _
    $region36: #{hybert_forward.7} parent=5 // pred_fallthru
      _
    %p710 = scmp.le.s32.totalorder 2, %s10
    // Predicated region
    $region41: #{hybert_forward.7} parent=5 // pred_check
      %p711 = pneg %p710
    $region42: #{hybert_forward.7} parent=5 // pred_check_branch
      %713 = sbr.rel (%p711) target = $region44
    $region43: #{hybert_forward.7} parent=5 // pred_region
      %s714 = ssub.s32 %s10, 2
      // Predicated region
      $region45: #{hybert_forward.7} parent=43 // pred_check
        %p715 = pneg %p143
      $region46: #{hybert_forward.7} parent=43 // pred_check_branch
        %717 = sbr.rel (%p715) target = $region48
      $region47: #{hybert_forward.7} parent=43 // pred_region
        %p718 = scmp.lt.s32.totalorder %s16, 1
        %s719 = scalar_select %p718, %s16, 1
        %s720 = smul.addr %s719, 4
        %s721 = smul.addr %s720, 8
        %s722 = scalar_lea.vmem %s4, %s721
      $region48: #{hybert_forward.7} parent=43 // pred_fallthru
        _
    $region44: #{hybert_forward.7} parent=5 // pred_fallthru
      _
  $region6: #{hybert_forward.7} parent=0 // loop_footer
    %s14 = sadd.s32 1, %s10
  $region7: #{hybert_forward.7} parent=0 // loop_footer_branch
    %9 = sbr.rel target = $region3
  $region8: #{hybert_forward.7} parent=0 // loop_exit
    _

// kernel: hybert_forward.10
$region0: #{hybert_forward.10}
  #allocation0 [shape = 'u32[]', space=smem, size = 0x4, offset = 0x4, fixed_abs, tag = 'smem constant byte address 0x4 - core index']
  #allocation1 [shape = 'u32[144,128]{1,0:T(1,128)}', space=vmem, size = 0x12000, scoped, tag = 'internal scratch']
  #allocation2 [shape = 'f32[16,32]{1,0:T(8,128)}', space=vmem, size = 0x2000, scoped, tag = 'scratch operand']
  %s0 = inlined_call_operand.vmem [shape: bf16[16,64], index: 0, kind: input, shape index: {}]
  %s1 = inlined_call_operand.vmem [shape: bf16[64,32], index: 1, kind: input, shape index: {}]
  %s2 = inlined_call_operand.vmem [shape: f32[1,32], index: 2, kind: input, shape index: {}]
  %s3 = inlined_call_operand.vmem [shape: f32[16,32], index: 3, kind: output, shape index: {}]
  %s4 = sld [smem:[#allocation0]]
  $region30: #{hybert_forward.10} parent=0
    _
  %s6 = ssub.s32 1, %s4
  %s7 = scalar_select 0, %s6, %s4
  // Predicated region
  $region2: #{hybert_forward.10} parent=0 // pred_check
    _
  $region3: #{hybert_forward.10} parent=0 // pred_check_branch
    %9 = sbr.rel (0) target = $region5
  $region4: #{hybert_forward.10} parent=0 // pred_region
    _
  $region5: #{hybert_forward.10} parent=0 // pred_fallthru
    _
  // Predicated region
  $region6: #{hybert_forward.10} parent=0 // pred_check
    _
  $region7: #{hybert_forward.10} parent=0 // pred_check_branch
    %11 = sbr.rel (0) target = $region9
  $region8: #{hybert_forward.10} parent=0 // pred_region
    _
  $region9: #{hybert_forward.10} parent=0 // pred_fallthru
    _
  // Predicated region
  $region10: #{hybert_forward.10} parent=0 // pred_check
    _
  $region11: #{hybert_forward.10} parent=0 // pred_check_branch
    %13 = sbr.rel (0) target = $region13
  $region12: #{hybert_forward.10} parent=0 // pred_region
    _
  $region13: #{hybert_forward.10} parent=0 // pred_fallthru
    _
  %p15 = scmp.eq.s32.totalorder 0, 0
  // Predicated region
  $region14: #{hybert_forward.10} parent=0 // pred_check
    %p16 = pneg %p15
  $region15: #{hybert_forward.10} parent=0 // pred_check_branch
    %18 = sbr.rel (%p16) target = $region17
  $region16: #{hybert_forward.10} parent=0 // pred_region
    %vm19 = vcmask 261120
    %20 = vst.msk [vmem:[#allocation2] sm:$0xff] %vm19, 0.0
    %21 = vst.msk [vmem:[#allocation2 + $0x8] sm:$0xff] %vm19, 0.0
  $region17: #{hybert_forward.10} parent=0 // pred_fallthru
    _
  %v22 = vld [vmem:[#allocation2] sm:$0xff]
  %v23 = vld [vmem:[#allocation2 + $0x8] sm:$0xff]
  %v24 = vld [vmem:[%s0] sm:$0xf]
  %v25 = vld [vmem:[%s0 + $0x4] sm:$0xf]
  %v26 = vld [vmem:[%s1] sm:$0xf]
  %v27 = vld [vmem:[%s1 + $0x4] sm:$0xf]
  %v28 = vld [vmem:[%s1 + $0x8] sm:$0xf]
  %v29 = vld [vmem:[%s1 + $0xc] sm:$0xf]
  %v30 = vld [vmem:[%s1 + $0x10] sm:$0xf]
  %v31 = vld [vmem:[%s1 + $0x14] sm:$0xf]
  %v32 = vld [vmem:[%s1 + $0x18] sm:$0xf]
  %v33 = vld [vmem:[%s1 + $0x1c] sm:$0xf]
  %v36 = vunpack.c.l.b16 %v24
  %v37 = vunpack.c.l.b16 %v25
  %v38 = vpack.c.b16 %v37, %v36
  %v47 = vunpack.c.l.b16 %v26
  %v48 = vunpack.c.l.b16 %v27
  %v49 = vunpack.c.l.b16 %v28
  %v50 = vunpack.c.l.b16 %v29
  %v51 = vunpack.c.l.b16 %v30
  %v52 = vunpack.c.l.b16 %v31
  %v53 = vunpack.c.l.b16 %v32
  %v54 = vunpack.c.l.b16 %v33
  %v55 = vpack.c.b16 %v48, %v47
  %v56 = vpack.c.b16 %v50, %v49
  %v57 = vpack.c.b16 %v52, %v51
  %v58 = vpack.c.b16 %v54, %v53
  %vm63 = vcmask 523264
  %v65 = vsel %vm63, %v38, 0
  %67 = vmatprep.subr.bf16.mxu0 0
  %68 = vmatpush1.bf16.msra.mxu0 0
  %69 = vmatprep.subr.bf16.mxu0 0
  %70 = vmatpush1.bf16.msra.mxu0 0
  %71 = vmatprep.subr.bf16.mxu0 0
  %72 = vmatpush1.bf16.msra.mxu0 0
  %73 = vmatprep.subr.bf16.mxu0 0
  %74 = vmatpush1.bf16.msra.mxu0 0
  %75 = vmatprep.subr.bf16.mxu0 0
  %76 = vmatpush1.bf16.msra.mxu0 %v58
  %77 = vmatprep.subr.bf16.mxu0 0
  %78 = vmatpush1.bf16.msra.mxu0 %v57
  %79 = vmatprep.subr.bf16.mxu0 0
  %80 = vmatpush1.bf16.msra.mxu0 %v56
  %81 = vmatprep.subr.bf16.mxu0 0
  %82 = vmatpush1.bf16.msra.mxu0 %v55
  %83 = vmatprep.subr.bf16.mxu0 0
  %84 = vmatpush2.bf16.msra.mxu0 0
  %85 = vmatprep.subr.bf16.mxu0 0
  %86 = vmatpush2.bf16.msra.mxu0 0
  %87 = vmatprep.subr.bf16.mxu0 0
  %88 = vmatpush2.bf16.msra.mxu0 0
  %89 = vmatprep.subr.bf16.mxu0 0
  %90 = vmatpush2.bf16.msra.mxu0 0
  %91 = vmatprep.subr.bf16.mxu0 0
  %92 = vmatpush2.bf16.msra.mxu0 0
  %93 = vmatprep.subr.bf16.mxu0 0
  %94 = vmatpush2.bf16.msra.mxu0 0
  %95 = vmatprep.subr.bf16.mxu0 0
  %96 = vmatpush2.bf16.msra.mxu0 0
  %97 = vmatprep.subr.bf16.mxu0 0
  %98 = vmatpush2.bf16.msra.mxu0 0
  %99 = vmatprep.mubr.bf16.mxu0 0
  %100 = vmatmul.mubr.bf16.gmra.mxu0 %v65
  %v101 = vpop.f32.mrf.mxu0
  %v102 = vadd.f32 0.0, %v101
  %v103 = vpop.f32.mrf.mxu0
  %v104 = vpop.f32.mrf.mxu0
  %v105 = vadd.f32 0.0, %v104
  %v106 = vpop.f32.mrf.mxu0
  %107 = vdwg.mxu0
  %v108 = vadd.f32 %v22, %v102
  %v109 = vadd.f32 %v23, %v105
  %vm110 = vcmask 261120
  %111 = vst.msk [vmem:[#allocation2] sm:$0xff] %vm110, %v108
  %112 = vst.msk [vmem:[#allocation2 + $0x8] sm:$0xff] %vm110, %v109
  // Predicated region
  $region18: #{hybert_forward.10} parent=0 // pred_check
    %p113 = pneg %p15
  $region19: #{hybert_forward.10} parent=0 // pred_check_branch
    %115 = sbr.rel (%p113) target = $region21
  $region20: #{hybert_forward.10} parent=0 // pred_region
    %v116 = vld [vmem:[#allocation2] sm:$0xff]
    %v117 = vld [vmem:[#allocation2 + $0x8] sm:$0xff]
    %v118 = vld [vmem:[%s2] sm:$0x1]
    %v120 = vlaneseq
    %v121 = vshrl.u32 %v120, 7
    %v122 = vsub.s32 0, %v121
    %v123 = vrot.slane %v118, %v122
    %v125 = vadd.f32 %v116, %v123
    %v126 = vadd.f32 %v117, %v123
    %127 = vst.msk [vmem:[%s3] sm:$0xff] %vm110, %v125
    %128 = vst.msk [vmem:[%s3 + $0x8] sm:$0xff] %vm110, %v126
  $region21: #{hybert_forward.10} parent=0 // pred_fallthru
    _
  // Predicated region
  $region22: #{hybert_forward.10} parent=0 // pred_check
    _
  $region23: #{hybert_forward.10} parent=0 // pred_check_branch
    %130 = sbr.rel (0) target = $region25
  $region24: #{hybert_forward.10} parent=0 // pred_region
    _
  $region25: #{hybert_forward.10} parent=0 // pred_fallthru
    _
  // Predicated region
  $region26: #{hybert_forward.10} parent=0 // pred_check
    _
  $region27: #{hybert_forward.10} parent=0 // pred_check_branch
    %132 = sbr.rel (0) target = $region29
  $region28: #{hybert_forward.10} parent=0 // pred_region
    _
  $region29: #{hybert_forward.10} parent=0 // pred_fallthru
    _

// kernel: hybert_forward.9
$region0: #{hybert_forward.9}
  #allocation0 [shape = 'u32[]', space=smem, size = 0x4, offset = 0x4, fixed_abs, tag = 'smem constant byte address 0x4 - core index']
  #allocation1 [shape = 'u32[144,128]{1,0:T(1,128)}', space=vmem, size = 0x12000, scoped, tag = 'internal scratch']
  #allocation2 [shape = 'f32[16,64]{1,0:T(8,128)}', space=vmem, size = 0x2000, scoped, tag = 'scratch operand']
  %s0 = inlined_call_operand.vmem [shape: bf16[16,32], index: 0, kind: input, shape index: {}]
  %s1 = inlined_call_operand.vmem [shape: bf16[32,64], index: 1, kind: input, shape index: {}]
  %s2 = inlined_call_operand.vmem [shape: f32[1,64], index: 2, kind: input, shape index: {}]
  %s3 = inlined_call_operand.vmem [shape: f32[16,64], index: 3, kind: output, shape index: {}]
  %s4 = sld [smem:[#allocation0]]
  $region30: #{hybert_forward.9} parent=0
    _
  %s6 = ssub.s32 1, %s4
  %s7 = scalar_select 0, %s6, %s4
  // Predicated region
  $region2: #{hybert_forward.9} parent=0 // pred_check
    _
  $region3: #{hybert_forward.9} parent=0 // pred_check_branch
    %9 = sbr.rel (0) target = $region5
  $region4: #{hybert_forward.9} parent=0 // pred_region
    _
  $region5: #{hybert_forward.9} parent=0 // pred_fallthru
    _
  // Predicated region
  $region6: #{hybert_forward.9} parent=0 // pred_check
    _
  $region7: #{hybert_forward.9} parent=0 // pred_check_branch
    %11 = sbr.rel (0) target = $region9
  $region8: #{hybert_forward.9} parent=0 // pred_region
    _
  $region9: #{hybert_forward.9} parent=0 // pred_fallthru
    _
  // Predicated region
  $region10: #{hybert_forward.9} parent=0 // pred_check
    _
  $region11: #{hybert_forward.9} parent=0 // pred_check_branch
    %13 = sbr.rel (0) target = $region13
  $region12: #{hybert_forward.9} parent=0 // pred_region
    _
  $region13: #{hybert_forward.9} parent=0 // pred_fallthru
    _
  %p15 = scmp.eq.s32.totalorder 0, 0
  // Predicated region
  $region14: #{hybert_forward.9} parent=0 // pred_check
    %p16 = pneg %p15
  $region15: #{hybert_forward.9} parent=0 // pred_check_branch
    %18 = sbr.rel (%p16) target = $region17
  $region16: #{hybert_forward.9} parent=0 // pred_region
    %vm19 = vcmask 523264
    %20 = vst.msk [vmem:[#allocation2] sm:$0xff] %vm19, 0.0
    %21 = vst.msk [vmem:[#allocation2 + $0x8] sm:$0xff] %vm19, 0.0
  $region17: #{hybert_forward.9} parent=0 // pred_fallthru
    _
  %v22 = vld [vmem:[#allocation2] sm:$0xff]
  %v23 = vld [vmem:[#allocation2 + $0x8] sm:$0xff]
  %v24 = vld [vmem:[%s0] sm:$0xf]
  %v25 = vld [vmem:[%s0 + $0x4] sm:$0xf]
  %v26 = vld [vmem:[%s1] sm:$0xf]
  %v27 = vld [vmem:[%s1 + $0x4] sm:$0xf]
  %v28 = vld [vmem:[%s1 + $0x8] sm:$0xf]
  %v29 = vld [vmem:[%s1 + $0xc] sm:$0xf]
  %v32 = vunpack.c.l.b16 %v24
  %v33 = vunpack.c.l.b16 %v25
  %v34 = vpack.c.b16 %v33, %v32
  %v39 = vunpack.c.l.b16 %v26
  %v40 = vunpack.c.l.b16 %v27
  %v41 = vunpack.c.l.b16 %v28
  %v42 = vunpack.c.l.b16 %v29
  %v43 = vpack.c.b16 %v40, %v39
  %v44 = vpack.c.b16 %v42, %v41
  %vm47 = vcmask 261120
  %v49 = vsel %vm47, %v34, 0
  %51 = vmatprep.subr.bf16.mxu0 0
  %52 = vmatpush1.bf16.msra.mxu0 0
  %53 = vmatprep.subr.bf16.mxu0 0
  %54 = vmatpush1.bf16.msra.mxu0 0
  %55 = vmatprep.subr.bf16.mxu0 0
  %56 = vmatpush1.bf16.msra.mxu0 0
  %57 = vmatprep.subr.bf16.mxu0 0
  %58 = vmatpush1.bf16.msra.mxu0 0
  %59 = vmatprep.subr.bf16.mxu0 0
  %60 = vmatpush1.bf16.msra.mxu0 0
  %61 = vmatprep.subr.bf16.mxu0 0
  %62 = vmatpush1.bf16.msra.mxu0 0
  %63 = vmatprep.subr.bf16.mxu0 0
  %64 = vmatpush1.bf16.msra.mxu0 %v44
  %65 = vmatprep.subr.bf16.mxu0 0
  %66 = vmatpush1.bf16.msra.mxu0 %v43
  %67 = vmatprep.subr.bf16.mxu0 0
  %68 = vmatpush2.bf16.msra.mxu0 0
  %69 = vmatprep.subr.bf16.mxu0 0
  %70 = vmatpush2.bf16.msra.mxu0 0
  %71 = vmatprep.subr.bf16.mxu0 0
  %72 = vmatpush2.bf16.msra.mxu0 0
  %73 = vmatprep.subr.bf16.mxu0 0
  %74 = vmatpush2.bf16.msra.mxu0 0
  %75 = vmatprep.subr.bf16.mxu0 0
  %76 = vmatpush2.bf16.msra.mxu0 0
  %77 = vmatprep.subr.bf16.mxu0 0
  %78 = vmatpush2.bf16.msra.mxu0 0
  %79 = vmatprep.subr.bf16.mxu0 0
  %80 = vmatpush2.bf16.msra.mxu0 0
  %81 = vmatprep.subr.bf16.mxu0 0
  %82 = vmatpush2.bf16.msra.mxu0 0
  %83 = vmatprep.mubr.bf16.mxu0 0
  %84 = vmatmul.mubr.bf16.gmra.mxu0 %v49
  %v85 = vpop.f32.mrf.mxu0
  %v86 = vadd.f32 0.0, %v85
  %v87 = vpop.f32.mrf.mxu0
  %v88 = vpop.f32.mrf.mxu0
  %v89 = vadd.f32 0.0, %v88
  %v90 = vpop.f32.mrf.mxu0
  %91 = vdwg.mxu0
  %v92 = vadd.f32 %v22, %v86
  %v93 = vadd.f32 %v23, %v89
  %vm94 = vcmask 523264
  %95 = vst.msk [vmem:[#allocation2] sm:$0xff] %vm94, %v92
  %96 = vst.msk [vmem:[#allocation2 + $0x8] sm:$0xff] %vm94, %v93
  // Predicated region
  $region18: #{hybert_forward.9} parent=0 // pred_check
    %p97 = pneg %p15
  $region19: #{hybert_forward.9} parent=0 // pred_check_branch
    %99 = sbr.rel (%p97) target = $region21
  $region20: #{hybert_forward.9} parent=0 // pred_region
    %v100 = vld [vmem:[#allocation2] sm:$0xff]
    %v101 = vld [vmem:[#allocation2 + $0x8] sm:$0xff]
    %v102 = vld [vmem:[%s2] sm:$0x1]
    %v104 = vlaneseq
    %v105 = vshrl.u32 %v104, 7
    %v106 = vsub.s32 0, %v105
    %v107 = vrot.slane %v102, %v106
    %v109 = vadd.f32 %v100, %v107
    %v110 = vadd.f32 %v101, %v107
    %111 = vst.msk [vmem:[%s3] sm:$0xff] %vm94, %v109
    %112 = vst.msk [vmem:[%s3 + $0x8] sm:$0xff] %vm94, %v110
  $region21: #{hybert_forward.9} parent=0 // pred_fallthru
    _
  // Predicated region
  $region22: #{hybert_forward.9} parent=0 // pred_check
    _
  $region23: #{hybert_forward.9} parent=0 // pred_check_branch
    %114 = sbr.rel (0) target = $region25
  $region24: #{hybert_forward.9} parent=0 // pred_region
    _
  $region25: #{hybert_forward.9} parent=0 // pred_fallthru
    _
  // Predicated region
  $region26: #{hybert_forward.9} parent=0 // pred_check
    _
  $region27: #{hybert_forward.9} parent=0 // pred_check_branch
    %116 = sbr.rel (0) target = $region29
  $region28: #{hybert_forward.9} parent=0 // pred_region
    _
  $region29: #{hybert_forward.9} parent=0 // pred_fallthru
    _

// kernel: hybert_forward.11
$region0: #{hybert_forward.11}
  #allocation0 [shape = 'u32[]', space=smem, size = 0x4, offset = 0x4, fixed_abs, tag = 'smem constant byte address 0x4 - core index']
  #allocation1 [shape = 'u32[144,128]{1,0:T(1,128)}', space=vmem, size = 0x12000, scoped, tag = 'internal scratch']
  %s0 = inlined_call_operand.vmem [shape: bf16[2,8,32], index: 0, kind: input, shape index: {}]
  %s1 = inlined_call_operand.vmem [shape: f32[2,8], index: 1, kind: input, shape index: {}]
  %s2 = inlined_call_operand.vmem [shape: bf16[32,32], index: 2, kind: input, shape index: {}]
  %s3 = inlined_call_operand.vmem [shape: f32[1,32], index: 3, kind: input, shape index: {}]
  %s4 = inlined_call_operand.vmem [shape: bf16[32,128], index: 4, kind: input, shape index: {}]
  %s5 = inlined_call_operand.hbm [shape: f32[2,32], index: 5, kind: output, shape index: {0}]
  %s6 = inlined_call_operand.hbm [shape: f32[2,128], index: 6, kind: output, shape index: {1}]
  %7 = xla_tuple %s5, %s6
  %s8 = sld [smem:[#allocation0]]
  $region38: #{hybert_forward.11} parent=0
    _
  %s10 = ssub.s32 1, %s8
  %s11 = scalar_select 0, %s10, %s8
  $region1: #{hybert_forward.11} parent=0
    #allocation2 [shape = 'u8[1024]{0}', space=vmem, size = 0x400, scoped, tag = 'output window, operand 0, single buffered']
    #allocation3 [shape = 's32[1]{0}', space=sflag, size = 0x4, scoped, tag = 'scoped memory for hybert_forward.11']
    #allocation4 [shape = 'u8[1024]{0}', space=vmem, size = 0x400, scoped, tag = 'output window, operand 1, single buffered']
    #allocation5 [shape = 's32[1]{0}', space=sflag, size = 0x4, scoped, tag = 'scoped memory for hybert_forward.11']
    %12 = vsyncpa [#allocation3], 0
    %13 = vsyncpa [#allocation5], 0
    // Predicated region
    $region2: #{hybert_forward.11} parent=1 // pred_check
      _
    $region3: #{hybert_forward.11} parent=1 // pred_check_branch
      %15 = sbr.rel (0) target = $region5
    $region4: #{hybert_forward.11} parent=1 // pred_region
      _
    $region5: #{hybert_forward.11} parent=1 // pred_fallthru
      _
    // Predicated region
    $region6: #{hybert_forward.11} parent=1 // pred_check
      _
    $region7: #{hybert_forward.11} parent=1 // pred_check_branch
      %17 = sbr.rel (0) target = $region9
    $region8: #{hybert_forward.11} parent=1 // pred_region
      _
    $region9: #{hybert_forward.11} parent=1 // pred_fallthru
      _
    // Predicated region
    $region10: #{hybert_forward.11} parent=1 // pred_check
      _
    $region11: #{hybert_forward.11} parent=1 // pred_check_branch
      %19 = sbr.rel (0) target = $region13
    $region12: #{hybert_forward.11} parent=1 // pred_region
      _
    $region13: #{hybert_forward.11} parent=1 // pred_fallthru
      _
    // Predicated region
    $region14: #{hybert_forward.11} parent=1 // pred_check
      _
    $region15: #{hybert_forward.11} parent=1 // pred_check_branch
      %21 = sbr.rel (0) target = $region17
    $region16: #{hybert_forward.11} parent=1 // pred_region
      _
    $region17: #{hybert_forward.11} parent=1 // pred_fallthru
      _
    // Predicated region
    $region18: #{hybert_forward.11} parent=1 // pred_check
      _
    $region19: #{hybert_forward.11} parent=1 // pred_check_branch
      %23 = sbr.rel (0) target = $region21
    $region20: #{hybert_forward.11} parent=1 // pred_region
      _
    $region21: #{hybert_forward.11} parent=1 // pred_fallthru
      _
    %v25 = vld [vmem:[%s0] sm:$0xf]
    %v26 = vld [vmem:[%s0 + $0x4] sm:$0xf]
    %v27 = vld [vmem:[%s1] sm:$0x3]
    %v28 = vpack.c.bf16 %v27, %v27
    %v31 = vunpack.c.l.s4 1966171168
    %v32 = vunpack.c.0.s8 %v31
    %v33 = vlaneseq
    %v34 = vshrl.u32 %v33, 7
    %v35 = vsub.s32 %v32, %v34
    %v36 = vrot.slane %v28, %v35
    %v38 = vunpack.c.l.s4 1966171168
    %v39 = vunpack.c.0.s8 %v38
    %v40 = vlaneseq
    %v41 = vshrl.u32 %v40, 7
    %v42 = vsub.s32 %v39, %v41
    %v43 = vrot.slane %v36, %v42
    %v44 = vunpack.i.l.s16 %v43
    %v45 = vunpack.i.h.s16 %v43
    %v46 = vpack.i.b16 %v44, %v44
    %v47 = vlaneseq
    %v48 = vshrl.u32 %v47, 7
    %v49 = vsub.s32 0, %v48
    %v50 = vrot.slane %v46, %v49
    %vm51 = vcmask 64512
    %v53 = vsel %vm51, %v50, 0
    %vm55 = vcmask 1043456
    %v57 = vsel %vm55, %v25, 0
    %59 = vmatprep.subr.bf16.mxu0 0
    %60 = vmatpush1.bf16.msra.mxu0 0
    %61 = vmatprep.subr.bf16.mxu0 0
    %62 = vmatpush1.bf16.msra.mxu0 0
    %63 = vmatprep.subr.bf16.mxu0 0
    %64 = vmatpush1.bf16.msra.mxu0 0
    %65 = vmatprep.subr.bf16.mxu0 0
    %66 = vmatpush1.bf16.msra.mxu0 0
    %67 = vmatprep.subr.bf16.mxu0 0
    %68 = vmatpush1.bf16.msra.mxu0 0
    %69 = vmatprep.subr.bf16.mxu0 0
    %70 = vmatpush1.bf16.msra.mxu0 0
    %71 = vmatprep.subr.bf16.mxu0 0
    %72 = vmatpush1.bf16.msra.mxu0 0
    %73 = vmatprep.subr.bf16.mxu0 0
    %74 = vmatpush1.bf16.msra.mxu0 %v57
    %75 = vmatprep.subr.bf16.mxu0 0
    %76 = vmatpush2.bf16.msra.mxu0 0
    %77 = vmatprep.subr.bf16.mxu0 0
    %78 = vmatpush2.bf16.msra.mxu0 0
    %79 = vmatprep.subr.bf16.mxu0 0
    %80 = vmatpush2.bf16.msra.mxu0 0
    %81 = vmatprep.subr.bf16.mxu0 0
    %82 = vmatpush2.bf16.msra.mxu0 0
    %83 = vmatprep.subr.bf16.mxu0 0
    %84 = vmatpush2.bf16.msra.mxu0 0
    %85 = vmatprep.subr.bf16.mxu0 0
    %86 = vmatpush2.bf16.msra.mxu0 0
    %87 = vmatprep.subr.bf16.mxu0 0
    %88 = vmatpush2.bf16.msra.mxu0 0
    %89 = vmatprep.subr.bf16.mxu0 0
    %90 = vmatpush2.bf16.msra.mxu0 0
    %91 = vmatprep.mubr.bf16.mxu0 0
    %92 = vmatmul.mubr.bf16.gmra.mxu0 %v53
    %v93 = vpop.f32.mrf.mxu0
    %v94 = vadd.f32 0.0, %v93
    %v95 = vpop.f32.mrf.mxu0
    %v96 = vpop.f32.mrf.mxu0
    %v97 = vpop.f32.mrf.mxu0
    %98 = vdwg.mxu0
    %v99 = vpack.i.b16 %v45, %v45
    %v100 = vlaneseq
    %v101 = vshrl.u32 %v100, 7
    %v102 = vsub.s32 0, %v101
    %v103 = vrot.slane %v99, %v102
    %v105 = vsel %vm51, %v103, 0
    %v108 = vsel %vm55, %v26, 0
    %110 = vmatprep.subr.bf16.mxu0 0
    %111 = vmatpush1.bf16.msra.mxu0 0
    %112 = vmatprep.subr.bf16.mxu0 0
    %113 = vmatpush1.bf16.msra.mxu0 0
    %114 = vmatprep.subr.bf16.mxu0 0
    %115 = vmatpush1.bf16.msra.mxu0 0
    %116 = vmatprep.subr.bf16.mxu0 0
    %117 = vmatpush1.bf16.msra.mxu0 0
    %118 = vmatprep.subr.bf16.mxu0 0
    %119 = vmatpush1.bf16.msra.mxu0 0
    %120 = vmatprep.subr.bf16.mxu0 0
    %121 = vmatpush1.bf16.msra.mxu0 0
    %122 = vmatprep.subr.bf16.mxu0 0
    %123 = vmatpush1.bf16.msra.mxu0 0
    %124 = vmatprep.subr.bf16.mxu0 0
    %125 = vmatpush1.bf16.msra.mxu0 %v108
    %126 = vmatprep.subr.bf16.mxu0 0
    %127 = vmatpush2.bf16.msra.mxu0 0
    %128 = vmatprep.subr.bf16.mxu0 0
    %129 = vmatpush2.bf16.msra.mxu0 0
    %130 = vmatprep.subr.bf16.mxu0 0
    %131 = vmatpush2.bf16.msra.mxu0 0
    %132 = vmatprep.subr.bf16.mxu0 0
    %133 = vmatpush2.bf16.msra.mxu0 0
    %134 = vmatprep.subr.bf16.mxu0 0
    %135 = vmatpush2.bf16.msra.mxu0 0
    %136 = vmatprep.subr.bf16.mxu0 0
    %137 = vmatpush2.bf16.msra.mxu0 0
    %138 = vmatprep.subr.bf16.mxu0 0
    %139 = vmatpush2.bf16.msra.mxu0 0
    %140 = vmatprep.subr.bf16.mxu0 0
    %141 = vmatpush2.bf16.msra.mxu0 0
    %142 = vmatprep.mubr.bf16.mxu0 0
    %143 = vmatmul.mubr.bf16.gmra.mxu0 %v105
    %v144 = vpop.f32.mrf.mxu0
    %v145 = vadd.f32 0.0, %v144
    %v146 = vpop.f32.mrf.mxu0
    %v147 = vpop.f32.mrf.mxu0
    %v148 = vpop.f32.mrf.mxu0
    %149 = vdwg.mxu0
    %vm150 = vcmask 58368
    %v151 = vsel %vm150, %v27, 0.0
    %152 = vadd.xlane.f32.xlu0 %v151
    %v153 = vpop.xlane.xlu0 %152
    %v154 = vmax.f32 %v153, 1e-06
    %v156 = vrot.slane %v154, 1
    %v159 = vrcp.pop %v154
    %v160 = vmul.f32 %v94, %v159
    %v161 = vrcp.pop %v156
    %v162 = vmul.f32 %v145, %v161
    %v163 = vpack.c.bf16 %v160, %v160
    %v164 = vpack.c.bf16 %v162, %v162
    %v165 = vld [vmem:[%s2] sm:$0xf]
    %v166 = vld [vmem:[%s2 + $0x4] sm:$0xf]
    %v167 = vld [vmem:[%s2 + $0x8] sm:$0xf]
    %v168 = vld [vmem:[%s2 + $0xc] sm:$0xf]
    %v169 = vld [vmem:[%s3] sm:$0x1]
    %v171 = vlaneseq
    %v172 = vshrl.u32 %v171, 7
    %v173 = vsub.s32 0, %v172
    %v174 = vrot.slane %v169, %v173
    %v178 = vunpack.c.l.b16 %v163
    %v179 = vunpack.c.l.b16 %v164
    %v180 = vrot.slane %v179, 7
    %vm181 = vcmask 1041409
    %v182 = vsel %vm181, %v180, %v178
    %v183 = vpack.c.b16 %v182, %v182
    %v188 = vunpack.c.l.b16 %v165
    %v189 = vunpack.c.l.b16 %v166
    %v190 = vunpack.c.l.b16 %v167
    %v191 = vunpack.c.l.b16 %v168
    %v192 = vpack.c.b16 %v189, %v188
    %v193 = vpack.c.b16 %v191, %v190
    %vm196 = vcmask 261120
    %v198 = vsel %vm196, %v183, 0
    %200 = vmatprep.subr.bf16.mxu0 0
    %201 = vmatpush1.bf16.msra.mxu0 0
    %202 = vmatprep.subr.bf16.mxu0 0
    %203 = vmatpush1.bf16.msra.mxu0 0
    %204 = vmatprep.subr.bf16.mxu0 0
    %205 = vmatpush1.bf16.msra.mxu0 0
    %206 = vmatprep.subr.bf16.mxu0 0
    %207 = vmatpush1.bf16.msra.mxu0 0
    %208 = vmatprep.subr.bf16.mxu0 0
    %209 = vmatpush1.bf16.msra.mxu0 0
    %210 = vmatprep.subr.bf16.mxu0 0
    %211 = vmatpush1.bf16.msra.mxu0 0
    %212 = vmatprep.subr.bf16.mxu0 0
    %213 = vmatpush1.bf16.msra.mxu0 %v193
    %214 = vmatprep.subr.bf16.mxu0 0
    %215 = vmatpush1.bf16.msra.mxu0 %v192
    %216 = vmatprep.subr.bf16.mxu0 0
    %217 = vmatpush2.bf16.msra.mxu0 0
    %218 = vmatprep.subr.bf16.mxu0 0
    %219 = vmatpush2.bf16.msra.mxu0 0
    %220 = vmatprep.subr.bf16.mxu0 0
    %221 = vmatpush2.bf16.msra.mxu0 0
    %222 = vmatprep.subr.bf16.mxu0 0
    %223 = vmatpush2.bf16.msra.mxu0 0
    %224 = vmatprep.subr.bf16.mxu0 0
    %225 = vmatpush2.bf16.msra.mxu0 0
    %226 = vmatprep.subr.bf16.mxu0 0
    %227 = vmatpush2.bf16.msra.mxu0 0
    %228 = vmatprep.subr.bf16.mxu0 0
    %229 = vmatpush2.bf16.msra.mxu0 0
    %230 = vmatprep.subr.bf16.mxu0 0
    %231 = vmatpush2.bf16.msra.mxu0 0
    %232 = vmatprep.mubr.bf16.mxu0 0
    %233 = vmatmul.mubr.bf16.gmra.mxu0 %v198
    %v234 = vpop.f32.mrf.mxu0
    %v235 = vadd.f32 %v174, %v234
    %v236 = vpop.f32.mrf.mxu0
    %v237 = vpop.f32.mrf.mxu0
    %v238 = vpop.f32.mrf.mxu0
    %239 = vdwg.mxu0
    %vm240 = vcmask 254976
    %241 = vst.msk [vmem:[#allocation2] sm:$0x3] %vm240, %v235
    %v242 = vpack.c.bf16 %v235, %v235
    %v243 = vld [vmem:[%s4] sm:$0xf]
    %v244 = vld [vmem:[%s4 + $0x4] sm:$0xf]
    %v245 = vld [vmem:[%s4 + $0x8] sm:$0xf]
    %v246 = vld [vmem:[%s4 + $0xc] sm:$0xf]
    %v251 = vunpack.c.l.b16 %v243
    %v252 = vunpack.c.l.b16 %v244
    %v253 = vunpack.c.l.b16 %v245
    %v254 = vunpack.c.l.b16 %v246
    %v255 = vpack.c.b16 %v252, %v251
    %v256 = vpack.c.b16 %v254, %v253
    %v260 = vsel %vm196, %v242, 0
    %262 = vmatprep.subr.bf16.mxu0 0
    %263 = vmatpush1.bf16.msra.mxu0 0
    %264 = vmatprep.subr.bf16.mxu0 0
    %265 = vmatpush1.bf16.msra.mxu0 0
    %266 = vmatprep.subr.bf16.mxu0 0
    %267 = vmatpush1.bf16.msra.mxu0 0
    %268 = vmatprep.subr.bf16.mxu0 0
    %269 = vmatpush1.bf16.msra.mxu0 0
    %270 = vmatprep.subr.bf16.mxu0 0
    %271 = vmatpush1.bf16.msra.mxu0 0
    %272 = vmatprep.subr.bf16.mxu0 0
    %273 = vmatpush1.bf16.msra.mxu0 0
    %274 = vmatprep.subr.bf16.mxu0 0
    %275 = vmatpush1.bf16.msra.mxu0 %v256
    %276 = vmatprep.subr.bf16.mxu0 0
    %277 = vmatpush1.bf16.msra.mxu0 %v255
    %278 = vmatprep.subr.bf16.mxu0 0
    %279 = vmatpush2.bf16.msra.mxu0 0
    %280 = vmatprep.subr.bf16.mxu0 0
    %281 = vmatpush2.bf16.msra.mxu0 0
    %282 = vmatprep.subr.bf16.mxu0 0
    %283 = vmatpush2.bf16.msra.mxu0 0
    %284 = vmatprep.subr.bf16.mxu0 0
    %285 = vmatpush2.bf16.msra.mxu0 0
    %286 = vmatprep.subr.bf16.mxu0 0
    %287 = vmatpush2.bf16.msra.mxu0 0
    %288 = vmatprep.subr.bf16.mxu0 0
    %289 = vmatpush2.bf16.msra.mxu0 0
    %290 = vmatprep.subr.bf16.mxu0 0
    %291 = vmatpush2.bf16.msra.mxu0 0
    %292 = vmatprep.subr.bf16.mxu0 0
    %293 = vmatpush2.bf16.msra.mxu0 0
    %294 = vmatprep.mubr.bf16.mxu0 0
    %295 = vmatmul.mubr.bf16.gmra.mxu0 %v260
    %v296 = vpop.f32.mrf.mxu0
    %v297 = vadd.f32 0.0, %v296
    %v298 = vpop.f32.mrf.mxu0
    %v299 = vpop.f32.mrf.mxu0
    %v300 = vpop.f32.mrf.mxu0
    %301 = vdwg.mxu0
    %v302 = vlaneseq
    %v303 = vand.u32 %v302, 127
    %vm304 = vcmp.lt.s32.totalorder %v303, 16
    %v305 = vsel %vm304, %v297, -1e+30
    %vm306 = vcmask 1041408
    %v307 = vsel %vm306, %v305, -inf
    %308 = vmax.xlane.f32.xlu0 %v307
    %v309 = vpop.xlane.xlu0 %308
    %v310 = vsub.f32 %v305, %v309
    %v311 = vmul.f32 %v310, 1.442695
    %v312 = vpow.pop %v311
    %v313 = vsel %vm306, %v312, 0.0
    %314 = vadd.xlane.f32.xlu0 %v313
    %v315 = vpop.xlane.xlu0 %314
    %v316 = vlog2.pop %v315
    %v317 = vmul.f32 %v316, 0.6931472
    %v318 = vsub.f32 %v310, %v317
    %319 = vst [vmem:[#allocation4] sm:$0x3] %v318
    // Predicated region
    $region22: #{hybert_forward.11} parent=1 // pred_check
      _
    $region23: #{hybert_forward.11} parent=1 // pred_check_branch
      %321 = sbr.rel (0) target = $region25
    $region24: #{hybert_forward.11} parent=1 // pred_region
      %s323 = ssub.s32 32, 32
      %324 = vsyncadd [#allocation3], %s323
      %s326 = sshll.u32 [#allocation2], 4
      %s327 = int_to_ptr.vmem [resolvable:$true] %s326
      %329 = dma.vmem_to_hbm [thread:$0]  %s327, 32, %s5, [#allocation3]
    $region25: #{hybert_forward.11} parent=1 // pred_fallthru
      _
    // Predicated region
    $region26: #{hybert_forward.11} parent=1 // pred_check
      _
    $region27: #{hybert_forward.11} parent=1 // pred_check_branch
      %331 = sbr.rel (0) target = $region29
    $region28: #{hybert_forward.11} parent=1 // pred_region
      %s333 = ssub.s32 32, 32
      %334 = vsyncadd [#allocation5], %s333
      %s336 = sshll.u32 [#allocation4], 4
      %s337 = int_to_ptr.vmem [resolvable:$true] %s336
      %339 = dma.vmem_to_hbm [thread:$0]  %s337, 32, %s6, [#allocation5]
    $region29: #{hybert_forward.11} parent=1 // pred_fallthru
      _
    // Predicated region
    $region30: #{hybert_forward.11} parent=1 // pred_check
      _
    $region31: #{hybert_forward.11} parent=1 // pred_check_branch
      %341 = sbr.rel (0) target = $region33
    $region32: #{hybert_forward.11} parent=1 // pred_region
      %342 = dma.done [#allocation3], 32
    $region33: #{hybert_forward.11} parent=1 // pred_fallthru
      _
    // Predicated region
    $region34: #{hybert_forward.11} parent=1 // pred_check
      _
    $region35: #{hybert_forward.11} parent=1 // pred_check_branch
      %344 = sbr.rel (0) target = $region37
    $region36: #{hybert_forward.11} parent=1 // pred_region
      %345 = dma.done [#allocation5], 32
    $region37: #{hybert_forward.11} parent=1 // pred_fallthru
      _
    %346 = vsyncpa [#allocation3], 1
    %347 = vsyncpa [#allocation5], 1

</llo_original>
